<compile_context>
chip_gen: v7x
topology: tpu7x:2x2x1
jax: 0.10.0
libtpu: 0.0.40
codegen_flags: <defaults>
</compile_context>

<pallas_src>
import functools
import math

import jax
import jax.numpy as jnp
from jax import lax
from jax.experimental import pallas as pl
from jax.experimental.pallas import tpu as pltpu

INF = 1e10          # matches model.py INF
LN_EPS = 1e-6       # LayerNorm eps in model.py
NEG_BIG = -1e9      # masked logit (reference: (s - 1e10)/sqrt(D) ~ -8.8e8)
MIN_INIT = -1e30    # finite running-max init (avoids inf-inf NaNs)


def _vmem_limit_bytes():
    # v5e/v6e: 128 MiB physical VMEM per core; v7x: 64 MiB.  Leave ~25%
    # headroom for Mosaic internal scratch and double-buffered input windows.
    try:
        cap = pltpu.get_tpu_info().vmem_capacity_bytes
    except Exception:
        return 48 * 1024 * 1024
    return int(min(cap * 3 // 4, 100 * 1024 * 1024))


def _pick_tile(total, limit):
    t = min(limit, total)
    if t < total:
        t = max(8, (t // 8) * 8)      # (8, 128) block-shape rule (sublane axis)
    return t


# --------------------------------------------------------------------------
# Kernel 1: MultiHead2 attention + residual + LayerNorm
#   grid = (B, n_q_tiles, n_k_tiles); k axis is an online-softmax reduction.
# --------------------------------------------------------------------------
def _mha_residual_ln_kernel(xq_ref, xkv_ref,
                            wq_ref, bq_ref, wk_ref, bk_ref, wv_ref, bv_ref,
                            wo_ref, bo_ref, gamma_ref, beta_ref,
                            out_ref,
                            q_scr, m_scr, l_scr, acc_scr,
                            *, n_heads, causal, tk_total):
    tq, D = xq_ref.shape[1], xq_ref.shape[2]
    tk = xkv_ref.shape[1]
    Dh = D // n_heads
    inv_scale = 1.0 / math.sqrt(D)   # Attention(d_key=d_model) -> scale=sqrt(d_model)

    qi = pl.program_id(1)
    ki = pl.program_id(2)
    nk = pl.num_programs(2)

    # ---- first k tile for this (batch, q-tile): project q, reset state -----
    @pl.when(ki == 0)
    def _():
        xq_bf = xq_ref[0].astype(jnp.bfloat16)
        q = jnp.dot(xq_bf, wq_ref[...],
                    preferred_element_type=jnp.float32) + bq_ref[...]
        q_scr[...] = q.astype(jnp.bfloat16)
        m_scr[...] = jnp.full_like(m_scr, MIN_INIT)
        l_scr[...] = jnp.zeros_like(l_scr)
        acc_scr[...] = jnp.zeros_like(acc_scr)

    # ---- online-softmax update with the current k/v tile --------------------
    def process_tile():
        e_bf = xkv_ref[0].astype(jnp.bfloat16)                         # (tk, D)
        k = jnp.dot(e_bf, wk_ref[...],
                    preferred_element_type=jnp.float32) + bk_ref[...]
        v = jnp.dot(e_bf, wv_ref[...],
                    preferred_element_type=jnp.float32) + bv_ref[...]

        masked = None
        if causal:
            q_pos = qi * tq + lax.broadcasted_iota(jnp.int32, (tq, tk), 0)
            k_pos = ki * tk + lax.broadcasted_iota(jnp.int32, (tq, tk), 1)
            masked = k_pos > q_pos
        if tk_total % tk != 0:
            # ragged last k tile: out-of-bounds rows must not reach acc / l.
            k_row = ki * tk + lax.broadcasted_iota(jnp.int32, (tk, 1), 0)
            v = jnp.where(k_row < tk_total, v, 0.0)
            pad = (ki * tk
                   + lax.broadcasted_iota(jnp.int32, (tq, tk), 1)) >= tk_total
            masked = pad if masked is None else jnp.logical_or(masked, pad)

        k_bf = k.astype(jnp.bfloat16)
        v_bf = v.astype(jnp.bfloat16)

        for h in range(n_heads):                     # unrolled; n_heads is small
            sl = slice(h * Dh, (h + 1) * Dh)
            s = lax.dot_general(q_scr[:, sl], k_bf[:, sl],
                                (((1,), (1,)), ((), ())),
                                preferred_element_type=jnp.float32)   # (tq, tk)
            logits = s * inv_scale
            if masked is not None:
                logits = jnp.where(masked, jnp.float32(NEG_BIG), logits)
            m_old = m_scr[:, h:h + 1]
            m_new = jnp.maximum(m_old, jnp.max(logits, axis=-1, keepdims=True))
            alpha = jnp.exp(m_old - m_new)
            p = jnp.exp(logits - m_new)
            l_scr[:, h:h + 1] = (alpha * l_scr[:, h:h + 1]
                                 + jnp.sum(p, axis=-1, keepdims=True))
            acc_scr[:, sl] = alpha * acc_scr[:, sl] + jnp.dot(
                p.astype(jnp.bfloat16), v_bf[:, sl],
                preferred_element_type=jnp.float32)
            m_scr[:, h:h + 1] = m_new

    if causal:
        # skip k tiles entirely above the diagonal for this q tile
        @pl.when(ki * tk <= qi * tq + (tq - 1))
        def _():
            process_tile()
    else:
        process_tile()

    # ---- last k tile: normalize, fused output projection, residual + LN ----
    @pl.when(ki == nk - 1)
    def _():
        inv_l = pl.reciprocal(l_scr[...], approx=True)        # (tq, n_heads)
        for h in range(n_heads):
            sl = slice(h * Dh, (h + 1) * Dh)
            acc_scr[:, sl] = acc_scr[:, sl] * inv_l[:, h:h + 1]
        ctx = acc_scr[...].astype(jnp.bfloat16)                # (tq, D)
        attn = jnp.dot(ctx, wo_ref[...],                       # ONE K=D matmul
                       preferred_element_type=jnp.float32) + bo_ref[...]
        x = xq_ref[0].astype(jnp.float32)
        y = x + attn
        mean = jnp.mean(y, axis=-1, keepdims=True)
        d = y - mean
        std = jnp.sqrt(jnp.sum(d * d, axis=-1, keepdims=True) * (1.0 / (D - 1)))
        out = (gamma_ref[...] * d * pl.reciprocal(std + LN_EPS, approx=True)
               + beta_ref[...])
        out_ref[0] = out.astype(out_ref.dtype)


def mha_residual_ln(xq, xkv, blk, *, n_heads, causal,
                    q_tile=128, k_tile=256):
    B, Tq, D = xq.shape
    Tk = xkv.shape[1]
    assert D % n_heads == 0 and D % 128 == 0, (D, n_heads)

    tq = _pick_tile(Tq, q_tile)
    if B * pl.cdiv(Tq, tq) < 2 and Tq >= 16:   # >=2 parallel steps for v7x 2 TCs
        tq = _pick_tile(Tq, max(8, ((Tq // 2 + 7) // 8) * 8))
    tk = _pick_tile(Tk, k_tile)
    nq, nk = pl.cdiv(Tq, tq), pl.cdiv(Tk, tk)

    # bf16 weights: half the DMA bytes + full-rate MXU; biases / LN params f32.
    wq = blk["wq"].astype(jnp.bfloat16)
    wk = blk["wk"].astype(jnp.bfloat16)
    wv = blk["wv"].astype(jnp.bfloat16)
    wo = blk["wo"].astype(jnp.bfloat16)

    flops = 2 * B * (nq * tq * D * D          # q projections (per q tile)
                     + nq * nk * 2 * tk * D * D   # k/v projections (recomputed)
                     + 2 * Tq * Tk * D        # scores + context
                     + Tq * D * D)            # fused output projection
    transcendentals = B * n_heads * Tq * Tk
    bytes_accessed = 4 * (xq.size + xkv.size + B * Tq * D) + 2 * 4 * D * D + 40 * D

    kernel = functools.partial(_mha_residual_ln_kernel,
                               n_heads=n_heads, causal=causal, tk_total=Tk)
    wmap = lambda b, qi, ki: (0, 0)
    return pl.pallas_call(
        kernel,
        out_shape=jax.ShapeDtypeStruct((B, Tq, D), jnp.float32),
        grid=(B, nq, nk),
        in_specs=[
            pl.BlockSpec((1, tq, D), lambda b, qi, ki: (b, qi, 0)),
            pl.BlockSpec((1, tk, D), lambda b, qi, ki: (b, ki, 0)),
            pl.BlockSpec((D, D), wmap), pl.BlockSpec((1, D), wmap),
            pl.BlockSpec((D, D), wmap), pl.BlockSpec((1, D), wmap),
            pl.BlockSpec((D, D), wmap), pl.BlockSpec((1, D), wmap),
            pl.BlockSpec((D, D), wmap), pl.BlockSpec((1, D), wmap),
            pl.BlockSpec((1, D), wmap), pl.BlockSpec((1, D), wmap),
        ],
        out_specs=pl.BlockSpec((1, tq, D), lambda b, qi, ki: (b, qi, 0)),
        scratch_shapes=[
            pltpu.VMEM((tq, D), jnp.bfloat16),        # projected q (head columns)
            pltpu.VMEM((tq, n_heads), jnp.float32),   # running max per head
            pltpu.VMEM((tq, n_heads), jnp.float32),   # running denom per head
            pltpu.VMEM((tq, D), jnp.float32),         # running context acc
        ],
        compiler_params=pltpu.CompilerParams(
            dimension_semantics=("parallel", "parallel", "arbitrary"),
            vmem_limit_bytes=_vmem_limit_bytes()),
        cost_estimate=pl.CostEstimate(flops=flops,
                                      transcendentals=transcendentals,
                                      bytes_accessed=bytes_accessed),
    )(xq, xkv, wq, blk["bq"], wk, blk["bk"], wv, blk["bv"],
      wo, blk["bo"], blk["gamma"], blk["beta"])


# --------------------------------------------------------------------------
# Kernel 2: FeedForward + residual + LayerNorm (row-tiled over B*T)
# --------------------------------------------------------------------------
def _ffn_residual_ln_kernel(x_ref, w1_ref, b1_ref, w2_ref, b2_ref,
                            gamma_ref, beta_ref, out_ref):
    x = x_ref[...].astype(jnp.float32)                       # (tm, D)
    D = x.shape[-1]
    h = jnp.dot(x_ref[...].astype(jnp.bfloat16), w1_ref[...],
                preferred_element_type=jnp.float32) + b1_ref[...]
    h = jnp.maximum(h, 0.0).astype(jnp.bfloat16)
    f = jnp.dot(h, w2_ref[...],
                preferred_element_type=jnp.float32) + b2_ref[...]
    y = x + f
    mean = jnp.mean(y, axis=-1, keepdims=True)
    d = y - mean
    std = jnp.sqrt(jnp.sum(d * d, axis=-1, keepdims=True) * (1.0 / (D - 1)))
    out_ref[...] = (gamma_ref[...] * d * pl.reciprocal(std + LN_EPS, approx=True)
                    + beta_ref[...]).astype(out_ref.dtype)


def ffn_residual_ln(x, blk, *, tile_rows=256):
    B, T, D = x.shape
    H = blk["w1"].shape[1]
    rows = B * T
    tm = _pick_tile(rows, tile_rows)
    if rows >= 16 and pl.cdiv(rows, tm) < 2:   # >=2 parallel steps for v7x 2 TCs
        tm = _pick_tile(rows, max(8, ((rows // 2 + 7) // 8) * 8))
    xf = x.reshape(rows, D)

    w1 = blk["w1"].astype(jnp.bfloat16)
    w2 = blk["w2"].astype(jnp.bfloat16)

    flops = 4 * rows * D * H
    bytes_accessed = 4 * 2 * rows * D + 2 * 2 * D * H + 4 * (H + 3 * D)
    full2d = lambda i: (0, 0)
    out = pl.pallas_call(
        _ffn_residual_ln_kernel,
        out_shape=jax.ShapeDtypeStruct((rows, D), jnp.float32),
        grid=(pl.cdiv(rows, tm),),
        in_specs=[
            pl.BlockSpec((tm, D), lambda i: (i, 0)),
            pl.BlockSpec((D, H), full2d), pl.BlockSpec((1, H), full2d),
            pl.BlockSpec((H, D), full2d), pl.BlockSpec((1, D), full2d),
            pl.BlockSpec((1, D), full2d), pl.BlockSpec((1, D), full2d),
        ],
        out_specs=pl.BlockSpec((tm, D), lambda i: (i, 0)),
        compiler_params=pltpu.CompilerParams(
            dimension_semantics=("parallel",),
            vmem_limit_bytes=_vmem_limit_bytes()),
        cost_estimate=pl.CostEstimate(flops=flops, transcendentals=0,
                                      bytes_accessed=bytes_accessed),
    )(xf, w1, blk["b1"], w2, blk["b2"], blk["gamma"], blk["beta"])
    return out.reshape(B, T, D)


# --------------------------------------------------------------------------
# DecoderLayer.forward (positional=False, eval mode, masks=None)
# --------------------------------------------------------------------------
def decoder_layer_forward(x, encoding, params, *, n_heads,
                          q_tile=128, k_tile=256, ffn_tile=256):
    y = mha_residual_ln(x, x, params["self"], n_heads=n_heads, causal=True,
                        q_tile=q_tile, k_tile=k_tile)
    y = mha_residual_ln(y, encoding, params["cross"], n_heads=n_heads,
                        causal=False, q_tile=q_tile, k_tile=k_tile)
    y = ffn_residual_ln(y, params["ffn"], tile_rows=ffn_tile)
    return y


# --------------------------------------------------------------------------
# Pure-JAX f32 reference mirroring the PyTorch module
# --------------------------------------------------------------------------
def _reference(x, enc, params, n_heads):
    hp = lax.Precision.HIGHEST

    def ln(y, g, b):
        m = y.mean(-1, keepdims=True)
        std = jnp.sqrt(((y - m) ** 2).sum(-1, keepdims=True) / (y.shape[-1] - 1))
        return g * (y - m) / (std + LN_EPS) + b

    def mha(q_in, kv_in, p, causal):
        B, Tq, D = q_in.shape
        Tk = kv_in.shape[1]
        Dh = D // n_heads
        q = jnp.einsum("btd,de->bte", q_in, p["wq"], precision=hp) + p["bq"]
        k = jnp.einsum("btd,de->bte", kv_in, p["wk"], precision=hp) + p["bk"]
        v = jnp.einsum("btd,de->bte", kv_in, p["wv"], precision=hp) + p["bv"]
        qh = q.reshape(B, Tq, n_heads, Dh).transpose(0, 2, 1, 3)
        kh = k.reshape(B, Tk, n_heads, Dh).transpose(0, 2, 1, 3)
        vh = v.reshape(B, Tk, n_heads, Dh).transpose(0, 2, 1, 3)
        s = jnp.einsum("bnqd,bnkd->bnqk", qh, kh, precision=hp)
        if causal and Tq == Tk:
            s = s - jnp.triu(jnp.ones((Tq, Tk), jnp.float32), 1) * INF
        pr = jax.nn.softmax(s / math.sqrt(D), axis=-1)
        ctx = jnp.einsum("bnqk,bnkd->bnqd", pr, vh, precision=hp)
        ctx = ctx.transpose(0, 2, 1, 3).reshape(B, Tq, D)
        return jnp.einsum("btd,de->bte", ctx, p["wo"], precision=hp) + p["bo"]

    def ff(y, p):
        h = jax.nn.relu(jnp.einsum("btd,dh->bth", y, p["w1"], precision=hp)
                        + p["b1"])
        return jnp.einsum("bth,hd->btd", h, p["w2"], precision=hp) + p["b2"]

    ps, pc, pf = params["self"], params["cross"], params["ffn"]
    y = ln(x + mha(x, x, ps, True), ps["gamma"], ps["beta"])
    y = ln(y + mha(y, enc, pc, False), pc["gamma"], pc["beta"])
    y = ln(y + ff(y, pf), pf["gamma"], pf["beta"])
    return y


if __name__ == "__main__":
    # Small, lane-dense shapes consistent with the module (d_model multiple of 128).
    B, Tq, Tk = 2, 16, 24
    D, H, N_HEADS = 128, 256, 4

    key = jax.random.PRNGKey(0)
    k_x, k_e, k_self, k_cross, k_ffn = jax.random.split(key, 5)
    x = jax.random.normal(k_x, (B, Tq, D), jnp.float32)
    encoding = jax.random.normal(k_e, (B, Tk, D), jnp.float32)

    def linear_params(k, d_in, d_out):
        kw, kb = jax.random.split(k)
        bound = 1.0 / math.sqrt(d_in)
        w = jax.random.uniform(kw, (d_in, d_out), jnp.float32, -bound, bound)
        b = jax.random.uniform(kb, (1, d_out), jnp.float32, -bound, bound)
        return w, b

    def ln_params(k, d):
        kg, kb = jax.random.split(k)
        gamma = 1.0 + 0.1 * jax.random.normal(kg, (1, d), jnp.float32)
        beta = 0.1 * jax.random.normal(kb, (1, d), jnp.float32)
        return gamma, beta

    def attn_params(k):
        kq, kk, kv, ko, kl = jax.random.split(k, 5)
        wq, bq = linear_params(kq, D, D)
        wk, bk = linear_params(kk, D, D)
        wv, bv = linear_params(kv, D, D)
        wo, bo = linear_params(ko, D, D)
        gamma, beta = ln_params(kl, D)
        return dict(wq=wq, bq=bq, wk=wk, bk=bk, wv=wv, bv=bv,
                    wo=wo, bo=bo, gamma=gamma, beta=beta)

    def ffn_params(k):
        k1, k2, kl = jax.random.split(k, 3)
        w1, b1 = linear_params(k1, D, H)
        w2, b2 = linear_params(k2, H, D)
        gamma, beta = ln_params(kl, D)
        return dict(w1=w1, b1=b1, w2=w2, b2=b2, gamma=gamma, beta=beta)

    params = {"self": attn_params(k_self),
              "cross": attn_params(k_cross),
              "ffn": ffn_params(k_ffn)}

    # Config A: multi-k-step causal online-softmax + 2 q tiles + 2 FFN tiles.
    out_a = decoder_layer_forward(x, encoding, params, n_heads=N_HEADS,
                                  q_tile=8, k_tile=8, ffn_tile=16)
    out_a = jax.block_until_ready(out_a)
    # Config B: single-k-step self-attn + ragged (masked) last cross-attn k tile.
    out_b = decoder_layer_forward(x, encoding, params, n_heads=N_HEADS,
                                  q_tile=16, k_tile=16, ffn_tile=256)
    out_b = jax.block_until_ready(out_b)

    ref = _reference(x, encoding, params, N_HEADS)
    for out in (out_a, out_b):
        assert out.shape == (B, Tq, D), out.shape
        err = float(jnp.max(jnp.abs(out - ref)))
        # bf16 MXU operands + approx reciprocals loosen bitwise parity with the
        # f32 reference; accumulation and the LN epilogue stay f32.
        assert err < 6e-2, err
    print("KERNEL_OK")
</pallas_src>

<mosaic_0001>
module attributes {stable_mosaic.version = 11 : i64} {
  func.func @_mha_residual_ln_kernel(%arg0: i32, %arg1: i32, %arg2: i32, %arg3: memref<1x8x128xf32, #tpu.memory_space<vmem>>, %arg4: memref<1x8x128xf32, #tpu.memory_space<vmem>>, %arg5: memref<128x128xbf16, #tpu.memory_space<vmem>>, %arg6: memref<1x128xf32, #tpu.memory_space<vmem>>, %arg7: memref<128x128xbf16, #tpu.memory_space<vmem>>, %arg8: memref<1x128xf32, #tpu.memory_space<vmem>>, %arg9: memref<128x128xbf16, #tpu.memory_space<vmem>>, %arg10: memref<1x128xf32, #tpu.memory_space<vmem>>, %arg11: memref<128x128xbf16, #tpu.memory_space<vmem>>, %arg12: memref<1x128xf32, #tpu.memory_space<vmem>>, %arg13: memref<1x128xf32, #tpu.memory_space<vmem>>, %arg14: memref<1x128xf32, #tpu.memory_space<vmem>>, %arg15: memref<1x8x128xf32, #tpu.memory_space<vmem>>, %arg16: memref<8x128xbf16, #tpu.memory_space<vmem>>, %arg17: memref<8x4xf32, #tpu.memory_space<vmem>>, %arg18: memref<8x4xf32, #tpu.memory_space<vmem>>, %arg19: memref<8x128xf32, #tpu.memory_space<vmem>>) attributes {dimension_semantics = [#tpu.dimension_semantics<parallel>, #tpu.dimension_semantics<parallel>, #tpu.dimension_semantics<arbitrary>], iteration_bounds = array<i64: 2, 2, 2>, scalar_prefetch = 0 : i64, scratch_operands = 4 : i64, tpu.core_type = #tpu.core_type<tc>, window_params = [{transform_indices = @transform_0, window_bounds = array<i64: 1, 8, 128>}, {transform_indices = @transform_1, window_bounds = array<i64: 1, 8, 128>}, {pipeline_mode = #tpu.pipeline_mode<synchronous>, transform_indices = @transform_2, window_bounds = array<i64: 128, 128>}, {pipeline_mode = #tpu.pipeline_mode<synchronous>, transform_indices = @transform_3, window_bounds = array<i64: 1, 128>}, {pipeline_mode = #tpu.pipeline_mode<synchronous>, transform_indices = @transform_4, window_bounds = array<i64: 128, 128>}, {pipeline_mode = #tpu.pipeline_mode<synchronous>, transform_indices = @transform_5, window_bounds = array<i64: 1, 128>}, {pipeline_mode = #tpu.pipeline_mode<synchronous>, transform_indices = @transform_6, window_bounds = array<i64: 128, 128>}, {pipeline_mode = #tpu.pipeline_mode<synchronous>, transform_indices = @transform_7, window_bounds = array<i64: 1, 128>}, {pipeline_mode = #tpu.pipeline_mode<synchronous>, transform_indices = @transform_8, window_bounds = array<i64: 128, 128>}, {pipeline_mode = #tpu.pipeline_mode<synchronous>, transform_indices = @transform_9, window_bounds = array<i64: 1, 128>}, {pipeline_mode = #tpu.pipeline_mode<synchronous>, transform_indices = @transform_10, window_bounds = array<i64: 1, 128>}, {pipeline_mode = #tpu.pipeline_mode<synchronous>, transform_indices = @transform_11, window_bounds = array<i64: 1, 128>}, {transform_indices = @transform_12, window_bounds = array<i64: 1, 8, 128>}]} {
    %c0_i32 = arith.constant 0 : i32
    %0 = arith.cmpi eq, %arg2, %c0_i32 : i32
    %1 = arith.extui %0 : i1 to i32
    %c0_i32_0 = arith.constant 0 : i32
    %2 = arith.cmpi ne, %1, %c0_i32_0 : i32
    scf.if %2 {
      %c0 = arith.constant 0 : index
      %c0_4 = arith.constant 0 : index
      %c0_5 = arith.constant 0 : index
      %12 = vector.load %arg3[%c0, %c0_4, %c0_5] : memref<1x8x128xf32, #tpu.memory_space<vmem>>, vector<1x8x128xf32>
      %13 = vector.shape_cast %12 : vector<1x8x128xf32> to vector<8x128xf32>
      %14 = arith.truncf %13 : vector<8x128xf32> to vector<8x128xbf16>
      %c0_6 = arith.constant 0 : index
      %c0_7 = arith.constant 0 : index
      %15 = vector.load %arg5[%c0_6, %c0_7] : memref<128x128xbf16, #tpu.memory_space<vmem>>, vector<128x128xbf16>
      %cst = arith.constant dense<0.000000e+00> : vector<8x128xf32>
      %16 = tpu.matmul %14, %15, %cst {dimension_numbers = #tpu.dot_dimension_numbers<[1], [0], [0], [1], [0, 0, 1, 1], [], []>} : vector<8x128xbf16>, vector<128x128xbf16>, vector<8x128xf32> -> vector<8x128xf32>
      %c0_8 = arith.constant 0 : index
      %c0_9 = arith.constant 0 : index
      %17 = vector.load %arg6[%c0_8, %c0_9] : memref<1x128xf32, #tpu.memory_space<vmem>>, vector<1x128xf32>
      %18 = vector.broadcast %17 : vector<1x128xf32> to vector<8x128xf32>
      %19 = arith.addf %16, %18 : vector<8x128xf32>
      %20 = arith.truncf %19 : vector<8x128xf32> to vector<8x128xbf16>
      %c0_10 = arith.constant 0 : index
      %c0_11 = arith.constant 0 : index
      %21 = vector.load %arg16[%c0_10, %c0_11] : memref<8x128xbf16, #tpu.memory_space<vmem>>, vector<8x128xbf16>
      tpu.vector_store %arg16[%c0_10, %c0_11], %20 {strides = array<i32>} : memref<8x128xbf16, #tpu.memory_space<vmem>>, vector<8x128xbf16>,
      %cst_12 = arith.constant -1.000000e+30 : f32
      %22 = vector.broadcast %cst_12 : f32 to vector<8x4xf32>
      %c0_13 = arith.constant 0 : index
      %c0_14 = arith.constant 0 : index
      %23 = vector.load %arg17[%c0_13, %c0_14] : memref<8x4xf32, #tpu.memory_space<vmem>>, vector<8x4xf32>
      tpu.vector_store %arg17[%c0_13, %c0_14], %22 {strides = array<i32>} : memref<8x4xf32, #tpu.memory_space<vmem>>, vector<8x4xf32>,
      %cst_15 = arith.constant 0.000000e+00 : f32
      %24 = vector.broadcast %cst_15 : f32 to vector<8x4xf32>
      %c0_16 = arith.constant 0 : index
      %c0_17 = arith.constant 0 : index
      %25 = vector.load %arg18[%c0_16, %c0_17] : memref<8x4xf32, #tpu.memory_space<vmem>>, vector<8x4xf32>
      tpu.vector_store %arg18[%c0_16, %c0_17], %24 {strides = array<i32>} : memref<8x4xf32, #tpu.memory_space<vmem>>, vector<8x4xf32>,
      %cst_18 = arith.constant 0.000000e+00 : f32
      %26 = vector.broadcast %cst_18 : f32 to vector<8x128xf32>
      %c0_19 = arith.constant 0 : index
      %c0_20 = arith.constant 0 : index
      %27 = vector.load %arg19[%c0_19, %c0_20] : memref<8x128xf32, #tpu.memory_space<vmem>>, vector<8x128xf32>
      tpu.vector_store %arg19[%c0_19, %c0_20], %26 {strides = array<i32>} : memref<8x128xf32, #tpu.memory_space<vmem>>, vector<8x128xf32>,
    } else {
    }
    %c8_i32 = arith.constant 8 : i32
    %3 = arith.muli %arg2, %c8_i32 : i32
    %c8_i32_1 = arith.constant 8 : i32
    %4 = arith.muli %arg1, %c8_i32_1 : i32
    %c7_i32 = arith.constant 7 : i32
    %5 = arith.addi %4, %c7_i32 : i32
    %6 = arith.cmpi sle, %3, %5 : i32
    %7 = arith.extui %6 : i1 to i32
    %c0_i32_2 = arith.constant 0 : i32
    %8 = arith.cmpi ne, %7, %c0_i32_2 : i32
    scf.if %8 {
      %c0 = arith.constant 0 : index
      %c0_4 = arith.constant 0 : index
      %c0_5 = arith.constant 0 : index
      %12 = vector.load %arg4[%c0, %c0_4, %c0_5] : memref<1x8x128xf32, #tpu.memory_space<vmem>>, vector<1x8x128xf32>
      %13 = vector.shape_cast %12 : vector<1x8x128xf32> to vector<8x128xf32>
      %14 = arith.truncf %13 : vector<8x128xf32> to vector<8x128xbf16>
      %c0_6 = arith.constant 0 : index
      %c0_7 = arith.constant 0 : index
      %15 = vector.load %arg7[%c0_6, %c0_7] : memref<128x128xbf16, #tpu.memory_space<vmem>>, vector<128x128xbf16>
      %cst = arith.constant dense<0.000000e+00> : vector<8x128xf32>
      %16 = tpu.matmul %14, %15, %cst {dimension_numbers = #tpu.dot_dimension_numbers<[1], [0], [0], [1], [0, 0, 1, 1], [], []>} : vector<8x128xbf16>, vector<128x128xbf16>, vector<8x128xf32> -> vector<8x128xf32>
      %c0_8 = arith.constant 0 : index
      %c0_9 = arith.constant 0 : index
      %17 = vector.load %arg8[%c0_8, %c0_9] : memref<1x128xf32, #tpu.memory_space<vmem>>, vector<1x128xf32>
      %18 = vector.broadcast %17 : vector<1x128xf32> to vector<8x128xf32>
      %19 = arith.addf %16, %18 : vector<8x128xf32>
      %c0_10 = arith.constant 0 : index
      %c0_11 = arith.constant 0 : index
      %20 = vector.load %arg9[%c0_10, %c0_11] : memref<128x128xbf16, #tpu.memory_space<vmem>>, vector<128x128xbf16>
      %cst_12 = arith.constant dense<0.000000e+00> : vector<8x128xf32>
      %21 = tpu.matmul %14, %20, %cst_12 {dimension_numbers = #tpu.dot_dimension_numbers<[1], [0], [0], [1], [0, 0, 1, 1], [], []>} : vector<8x128xbf16>, vector<128x128xbf16>, vector<8x128xf32> -> vector<8x128xf32>
      %c0_13 = arith.constant 0 : index
      %c0_14 = arith.constant 0 : index
      %22 = vector.load %arg10[%c0_13, %c0_14] : memref<1x128xf32, #tpu.memory_space<vmem>>, vector<1x128xf32>
      %23 = vector.broadcast %22 : vector<1x128xf32> to vector<8x128xf32>
      %24 = arith.addf %21, %23 : vector<8x128xf32>
      %c8_i32_15 = arith.constant 8 : i32
      %25 = arith.muli %arg1, %c8_i32_15 : i32
      %26 = tpu.iota {dimensions = array<i32: 0>} : vector<8x8xi32>
      %27 = vector.broadcast %25 : i32 to vector<8x8xi32>
      %28 = arith.addi %27, %26 : vector<8x8xi32>
      %c8_i32_16 = arith.constant 8 : i32
      %29 = arith.muli %arg2, %c8_i32_16 : i32
      %30 = tpu.iota {dimensions = array<i32: 1>} : vector<8x8xi32>
      %31 = vector.broadcast %29 : i32 to vector<8x8xi32>
      %32 = arith.addi %31, %30 : vector<8x8xi32>
      %33 = arith.cmpi sgt, %32, %28 : vector<8x8xi32>
      %34 = arith.truncf %19 : vector<8x128xf32> to vector<8x128xbf16>
      %35 = arith.truncf %24 : vector<8x128xf32> to vector<8x128xbf16>
      %c0_17 = arith.constant 0 : index
      %c0_18 = arith.constant 0 : index
      %36 = vector.load %arg16[%c0_17, %c0_18] : memref<8x128xbf16, #tpu.memory_space<vmem>>, vector<8x32xbf16>
      %37 = vector.extract_strided_slice %34 {offsets = [0, 0], sizes = [8, 32], strides = [1, 1]} : vector<8x128xbf16> to vector<8x32xbf16>
      %cst_19 = arith.constant dense<0.000000e+00> : vector<8x8xf32>
      %38 = tpu.matmul %36, %37, %cst_19 {dimension_numbers = #tpu.dot_dimension_numbers<[1], [1], [0], [0], [0, 0, 1, 0], [], []>} : vector<8x32xbf16>, vector<8x32xbf16>, vector<8x8xf32> -> vector<8x8xf32>
      %cst_20 = arith.constant 0.0883883461 : f32
      %39 = vector.broadcast %cst_20 : f32 to vector<8x8xf32>
      %40 = arith.mulf %38, %39 : vector<8x8xf32>
      %cst_21 = arith.constant -1.000000e+09 : f32
      %41 = vector.broadcast %cst_21 : f32 to vector<8x8xf32>
      %42 = arith.select %33, %41, %40 : vector<8x8xi1>, vector<8x8xf32>
      %c0_22 = arith.constant 0 : index
      %c0_23 = arith.constant 0 : index
      %43 = vector.load %arg17[%c0_22, %c0_23] : memref<8x4xf32, #tpu.memory_space<vmem>>, vector<8x1xf32>
      %cst_24 = arith.constant dense<0xFF800000> : vector<8xf32>
      %44 = vector.multi_reduction <maximumf>, %42, %cst_24 [1] : vector<8x8xf32> to vector<8xf32>
      %45 = vector.shape_cast %44 : vector<8xf32> to vector<8x1xf32>
      %46 = arith.maximumf %43, %45 : vector<8x1xf32>
      %47 = arith.subf %43, %46 : vector<8x1xf32>
      %48 = math.exp %47 : vector<8x1xf32>
      %49 = vector.broadcast %46 : vector<8x1xf32> to vector<8x8xf32>
      %50 = arith.subf %42, %49 : vector<8x8xf32>
      %51 = math.exp %50 : vector<8x8xf32>
      %c0_25 = arith.constant 0 : index
      %c0_26 = arith.constant 0 : index
      %52 = vector.load %arg18[%c0_25, %c0_26] : memref<8x4xf32, #tpu.memory_space<vmem>>, vector<8x1xf32>
      %53 = arith.mulf %48, %52 : vector<8x1xf32>
      %cst_27 = arith.constant dense<0.000000e+00> : vector<8xf32>
      %54 = vector.multi_reduction <add>, %51, %cst_27 [1] : vector<8x8xf32> to vector<8xf32>
      %55 = vector.shape_cast %54 : vector<8xf32> to vector<8x1xf32>
      %56 = arith.addf %53, %55 : vector<8x1xf32>
      %c0_28 = arith.constant 0 : index
      %c0_29 = arith.constant 0 : index
      %57 = vector.load %arg18[%c0_28, %c0_29] : memref<8x4xf32, #tpu.memory_space<vmem>>, vector<8x1xf32>
      tpu.vector_store %arg18[%c0_28, %c0_29], %56 {strides = array<i32>} : memref<8x4xf32, #tpu.memory_space<vmem>>, vector<8x1xf32>,
      %c0_30 = arith.constant 0 : index
      %c0_31 = arith.constant 0 : index
      %58 = vector.load %arg19[%c0_30, %c0_31] : memref<8x128xf32, #tpu.memory_space<vmem>>, vector<8x32xf32>
      %59 = vector.broadcast %48 : vector<8x1xf32> to vector<8x32xf32>
      %60 = arith.mulf %59, %58 : vector<8x32xf32>
      %61 = arith.truncf %51 : vector<8x8xf32> to vector<8x8xbf16>
      %62 = vector.extract_strided_slice %35 {offsets = [0, 0], sizes = [8, 32], strides = [1, 1]} : vector<8x128xbf16> to vector<8x32xbf16>
      %cst_32 = arith.constant dense<0.000000e+00> : vector<8x32xf32>
      %63 = tpu.matmul %61, %62, %cst_32 {dimension_numbers = #tpu.dot_dimension_numbers<[1], [0], [0], [1], [0, 0, 1, 1], [], []>} : vector<8x8xbf16>, vector<8x32xbf16>, vector<8x32xf32> -> vector<8x32xf32>
      %64 = arith.addf %60, %63 : vector<8x32xf32>
      %c0_33 = arith.constant 0 : index
      %c0_34 = arith.constant 0 : index
      %65 = vector.load %arg19[%c0_33, %c0_34] : memref<8x128xf32, #tpu.memory_space<vmem>>, vector<8x32xf32>
      tpu.vector_store %arg19[%c0_33, %c0_34], %64 {strides = array<i32>} : memref<8x128xf32, #tpu.memory_space<vmem>>, vector<8x32xf32>,
      %c0_35 = arith.constant 0 : index
      %c0_36 = arith.constant 0 : index
      %66 = vector.load %arg17[%c0_35, %c0_36] : memref<8x4xf32, #tpu.memory_space<vmem>>, vector<8x1xf32>
      tpu.vector_store %arg17[%c0_35, %c0_36], %46 {strides = array<i32>} : memref<8x4xf32, #tpu.memory_space<vmem>>, vector<8x1xf32>,
      %c0_37 = arith.constant 0 : index
      %c32 = arith.constant 32 : index
      %67 = vector.load %arg16[%c0_37, %c32] : memref<8x128xbf16, #tpu.memory_space<vmem>>, vector<8x32xbf16>
      %68 = vector.extract_strided_slice %34 {offsets = [0, 32], sizes = [8, 32], strides = [1, 1]} : vector<8x128xbf16> to vector<8x32xbf16>
      %cst_38 = arith.constant dense<0.000000e+00> : vector<8x8xf32>
      %69 = tpu.matmul %67, %68, %cst_38 {dimension_numbers = #tpu.dot_dimension_numbers<[1], [1], [0], [0], [0, 0, 1, 0], [], []>} : vector<8x32xbf16>, vector<8x32xbf16>, vector<8x8xf32> -> vector<8x8xf32>
      %cst_39 = arith.constant 0.0883883461 : f32
      %70 = vector.broadcast %cst_39 : f32 to vector<8x8xf32>
      %71 = arith.mulf %69, %70 : vector<8x8xf32>
      %cst_40 = arith.constant -1.000000e+09 : f32
      %72 = vector.broadcast %cst_40 : f32 to vector<8x8xf32>
      %73 = arith.select %33, %72, %71 : vector<8x8xi1>, vector<8x8xf32>
      %c0_41 = arith.constant 0 : index
      %c1 = arith.constant 1 : index
      %74 = vector.load %arg17[%c0_41, %c1] : memref<8x4xf32, #tpu.memory_space<vmem>>, vector<8x1xf32>
      %cst_42 = arith.constant dense<0xFF800000> : vector<8xf32>
      %75 = vector.multi_reduction <maximumf>, %73, %cst_42 [1] : vector<8x8xf32> to vector<8xf32>
      %76 = vector.shape_cast %75 : vector<8xf32> to vector<8x1xf32>
      %77 = arith.maximumf %74, %76 : vector<8x1xf32>
      %78 = arith.subf %74, %77 : vector<8x1xf32>
      %79 = math.exp %78 : vector<8x1xf32>
      %80 = vector.broadcast %77 : vector<8x1xf32> to vector<8x8xf32>
      %81 = arith.subf %73, %80 : vector<8x8xf32>
      %82 = math.exp %81 : vector<8x8xf32>
      %c0_43 = arith.constant 0 : index
      %c1_44 = arith.constant 1 : index
      %83 = vector.load %arg18[%c0_43, %c1_44] : memref<8x4xf32, #tpu.memory_space<vmem>>, vector<8x1xf32>
      %84 = arith.mulf %79, %83 : vector<8x1xf32>
      %cst_45 = arith.constant dense<0.000000e+00> : vector<8xf32>
      %85 = vector.multi_reduction <add>, %82, %cst_45 [1] : vector<8x8xf32> to vector<8xf32>
      %86 = vector.shape_cast %85 : vector<8xf32> to vector<8x1xf32>
      %87 = arith.addf %84, %86 : vector<8x1xf32>
      %c0_46 = arith.constant 0 : index
      %c1_47 = arith.constant 1 : index
      %88 = vector.load %arg18[%c0_46, %c1_47] : memref<8x4xf32, #tpu.memory_space<vmem>>, vector<8x1xf32>
      tpu.vector_store %arg18[%c0_46, %c1_47], %87 {strides = array<i32>} : memref<8x4xf32, #tpu.memory_space<vmem>>, vector<8x1xf32>,
      %c0_48 = arith.constant 0 : index
      %c32_49 = arith.constant 32 : index
      %89 = vector.load %arg19[%c0_48, %c32_49] : memref<8x128xf32, #tpu.memory_space<vmem>>, vector<8x32xf32>
      %90 = vector.broadcast %79 : vector<8x1xf32> to vector<8x32xf32>
      %91 = arith.mulf %90, %89 : vector<8x32xf32>
      %92 = arith.truncf %82 : vector<8x8xf32> to vector<8x8xbf16>
      %93 = vector.extract_strided_slice %35 {offsets = [0, 32], sizes = [8, 32], strides = [1, 1]} : vector<8x128xbf16> to vector<8x32xbf16>
      %cst_50 = arith.constant dense<0.000000e+00> : vector<8x32xf32>
      %94 = tpu.matmul %92, %93, %cst_50 {dimension_numbers = #tpu.dot_dimension_numbers<[1], [0], [0], [1], [0, 0, 1, 1], [], []>} : vector<8x8xbf16>, vector<8x32xbf16>, vector<8x32xf32> -> vector<8x32xf32>
      %95 = arith.addf %91, %94 : vector<8x32xf32>
      %c0_51 = arith.constant 0 : index
      %c32_52 = arith.constant 32 : index
      %96 = vector.load %arg19[%c0_51, %c32_52] : memref<8x128xf32, #tpu.memory_space<vmem>>, vector<8x32xf32>
      tpu.vector_store %arg19[%c0_51, %c32_52], %95 {strides = array<i32>} : memref<8x128xf32, #tpu.memory_space<vmem>>, vector<8x32xf32>,
      %c0_53 = arith.constant 0 : index
      %c1_54 = arith.constant 1 : index
      %97 = vector.load %arg17[%c0_53, %c1_54] : memref<8x4xf32, #tpu.memory_space<vmem>>, vector<8x1xf32>
      tpu.vector_store %arg17[%c0_53, %c1_54], %77 {strides = array<i32>} : memref<8x4xf32, #tpu.memory_space<vmem>>, vector<8x1xf32>,
      %c0_55 = arith.constant 0 : index
      %c64 = arith.constant 64 : index
      %98 = vector.load %arg16[%c0_55, %c64] : memref<8x128xbf16, #tpu.memory_space<vmem>>, vector<8x32xbf16>
      %99 = vector.extract_strided_slice %34 {offsets = [0, 64], sizes = [8, 32], strides = [1, 1]} : vector<8x128xbf16> to vector<8x32xbf16>
      %cst_56 = arith.constant dense<0.000000e+00> : vector<8x8xf32>
      %100 = tpu.matmul %98, %99, %cst_56 {dimension_numbers = #tpu.dot_dimension_numbers<[1], [1], [0], [0], [0, 0, 1, 0], [], []>} : vector<8x32xbf16>, vector<8x32xbf16>, vector<8x8xf32> -> vector<8x8xf32>
      %cst_57 = arith.constant 0.0883883461 : f32
      %101 = vector.broadcast %cst_57 : f32 to vector<8x8xf32>
      %102 = arith.mulf %100, %101 : vector<8x8xf32>
      %cst_58 = arith.constant -1.000000e+09 : f32
      %103 = vector.broadcast %cst_58 : f32 to vector<8x8xf32>
      %104 = arith.select %33, %103, %102 : vector<8x8xi1>, vector<8x8xf32>
      %c0_59 = arith.constant 0 : index
      %c2 = arith.constant 2 : index
      %105 = vector.load %arg17[%c0_59, %c2] : memref<8x4xf32, #tpu.memory_space<vmem>>, vector<8x1xf32>
      %cst_60 = arith.constant dense<0xFF800000> : vector<8xf32>
      %106 = vector.multi_reduction <maximumf>, %104, %cst_60 [1] : vector<8x8xf32> to vector<8xf32>
      %107 = vector.shape_cast %106 : vector<8xf32> to vector<8x1xf32>
      %108 = arith.maximumf %105, %107 : vector<8x1xf32>
      %109 = arith.subf %105, %108 : vector<8x1xf32>
      %110 = math.exp %109 : vector<8x1xf32>
      %111 = vector.broadcast %108 : vector<8x1xf32> to vector<8x8xf32>
      %112 = arith.subf %104, %111 : vector<8x8xf32>
      %113 = math.exp %112 : vector<8x8xf32>
      %c0_61 = arith.constant 0 : index
      %c2_62 = arith.constant 2 : index
      %114 = vector.load %arg18[%c0_61, %c2_62] : memref<8x4xf32, #tpu.memory_space<vmem>>, vector<8x1xf32>
      %115 = arith.mulf %110, %114 : vector<8x1xf32>
      %cst_63 = arith.constant dense<0.000000e+00> : vector<8xf32>
      %116 = vector.multi_reduction <add>, %113, %cst_63 [1] : vector<8x8xf32> to vector<8xf32>
      %117 = vector.shape_cast %116 : vector<8xf32> to vector<8x1xf32>
      %118 = arith.addf %115, %117 : vector<8x1xf32>
      %c0_64 = arith.constant 0 : index
      %c2_65 = arith.constant 2 : index
      %119 = vector.load %arg18[%c0_64, %c2_65] : memref<8x4xf32, #tpu.memory_space<vmem>>, vector<8x1xf32>
      tpu.vector_store %arg18[%c0_64, %c2_65], %118 {strides = array<i32>} : memref<8x4xf32, #tpu.memory_space<vmem>>, vector<8x1xf32>,
      %c0_66 = arith.constant 0 : index
      %c64_67 = arith.constant 64 : index
      %120 = vector.load %arg19[%c0_66, %c64_67] : memref<8x128xf32, #tpu.memory_space<vmem>>, vector<8x32xf32>
      %121 = vector.broadcast %110 : vector<8x1xf32> to vector<8x32xf32>
      %122 = arith.mulf %121, %120 : vector<8x32xf32>
      %123 = arith.truncf %113 : vector<8x8xf32> to vector<8x8xbf16>
      %124 = vector.extract_strided_slice %35 {offsets = [0, 64], sizes = [8, 32], strides = [1, 1]} : vector<8x128xbf16> to vector<8x32xbf16>
      %cst_68 = arith.constant dense<0.000000e+00> : vector<8x32xf32>
      %125 = tpu.matmul %123, %124, %cst_68 {dimension_numbers = #tpu.dot_dimension_numbers<[1], [0], [0], [1], [0, 0, 1, 1], [], []>} : vector<8x8xbf16>, vector<8x32xbf16>, vector<8x32xf32> -> vector<8x32xf32>
      %126 = arith.addf %122, %125 : vector<8x32xf32>
      %c0_69 = arith.constant 0 : index
      %c64_70 = arith.constant 64 : index
      %127 = vector.load %arg19[%c0_69, %c64_70] : memref<8x128xf32, #tpu.memory_space<vmem>>, vector<8x32xf32>
      tpu.vector_store %arg19[%c0_69, %c64_70], %126 {strides = array<i32>} : memref<8x128xf32, #tpu.memory_space<vmem>>, vector<8x32xf32>,
      %c0_71 = arith.constant 0 : index
      %c2_72 = arith.constant 2 : index
      %128 = vector.load %arg17[%c0_71, %c2_72] : memref<8x4xf32, #tpu.memory_space<vmem>>, vector<8x1xf32>
      tpu.vector_store %arg17[%c0_71, %c2_72], %108 {strides = array<i32>} : memref<8x4xf32, #tpu.memory_space<vmem>>, vector<8x1xf32>,
      %c0_73 = arith.constant 0 : index
      %c96 = arith.constant 96 : index
      %129 = vector.load %arg16[%c0_73, %c96] : memref<8x128xbf16, #tpu.memory_space<vmem>>, vector<8x32xbf16>
      %130 = vector.extract_strided_slice %34 {offsets = [0, 96], sizes = [8, 32], strides = [1, 1]} : vector<8x128xbf16> to vector<8x32xbf16>
      %cst_74 = arith.constant dense<0.000000e+00> : vector<8x8xf32>
      %131 = tpu.matmul %129, %130, %cst_74 {dimension_numbers = #tpu.dot_dimension_numbers<[1], [1], [0], [0], [0, 0, 1, 0], [], []>} : vector<8x32xbf16>, vector<8x32xbf16>, vector<8x8xf32> -> vector<8x8xf32>
      %cst_75 = arith.constant 0.0883883461 : f32
      %132 = vector.broadcast %cst_75 : f32 to vector<8x8xf32>
      %133 = arith.mulf %131, %132 : vector<8x8xf32>
      %cst_76 = arith.constant -1.000000e+09 : f32
      %134 = vector.broadcast %cst_76 : f32 to vector<8x8xf32>
      %135 = arith.select %33, %134, %133 : vector<8x8xi1>, vector<8x8xf32>
      %c0_77 = arith.constant 0 : index
      %c3 = arith.constant 3 : index
      %136 = vector.load %arg17[%c0_77, %c3] : memref<8x4xf32, #tpu.memory_space<vmem>>, vector<8x1xf32>
      %cst_78 = arith.constant dense<0xFF800000> : vector<8xf32>
      %137 = vector.multi_reduction <maximumf>, %135, %cst_78 [1] : vector<8x8xf32> to vector<8xf32>
      %138 = vector.shape_cast %137 : vector<8xf32> to vector<8x1xf32>
      %139 = arith.maximumf %136, %138 : vector<8x1xf32>
      %140 = arith.subf %136, %139 : vector<8x1xf32>
      %141 = math.exp %140 : vector<8x1xf32>
      %142 = vector.broadcast %139 : vector<8x1xf32> to vector<8x8xf32>
      %143 = arith.subf %135, %142 : vector<8x8xf32>
      %144 = math.exp %143 : vector<8x8xf32>
      %c0_79 = arith.constant 0 : index
      %c3_80 = arith.constant 3 : index
      %145 = vector.load %arg18[%c0_79, %c3_80] : memref<8x4xf32, #tpu.memory_space<vmem>>, vector<8x1xf32>
      %146 = arith.mulf %141, %145 : vector<8x1xf32>
      %cst_81 = arith.constant dense<0.000000e+00> : vector<8xf32>
      %147 = vector.multi_reduction <add>, %144, %cst_81 [1] : vector<8x8xf32> to vector<8xf32>
      %148 = vector.shape_cast %147 : vector<8xf32> to vector<8x1xf32>
      %149 = arith.addf %146, %148 : vector<8x1xf32>
      %c0_82 = arith.constant 0 : index
      %c3_83 = arith.constant 3 : index
      %150 = vector.load %arg18[%c0_82, %c3_83] : memref<8x4xf32, #tpu.memory_space<vmem>>, vector<8x1xf32>
      tpu.vector_store %arg18[%c0_82, %c3_83], %149 {strides = array<i32>} : memref<8x4xf32, #tpu.memory_space<vmem>>, vector<8x1xf32>,
      %c0_84 = arith.constant 0 : index
      %c96_85 = arith.constant 96 : index
      %151 = vector.load %arg19[%c0_84, %c96_85] : memref<8x128xf32, #tpu.memory_space<vmem>>, vector<8x32xf32>
      %152 = vector.broadcast %141 : vector<8x1xf32> to vector<8x32xf32>
      %153 = arith.mulf %152, %151 : vector<8x32xf32>
      %154 = arith.truncf %144 : vector<8x8xf32> to vector<8x8xbf16>
      %155 = vector.extract_strided_slice %35 {offsets = [0, 96], sizes = [8, 32], strides = [1, 1]} : vector<8x128xbf16> to vector<8x32xbf16>
      %cst_86 = arith.constant dense<0.000000e+00> : vector<8x32xf32>
      %156 = tpu.matmul %154, %155, %cst_86 {dimension_numbers = #tpu.dot_dimension_numbers<[1], [0], [0], [1], [0, 0, 1, 1], [], []>} : vector<8x8xbf16>, vector<8x32xbf16>, vector<8x32xf32> -> vector<8x32xf32>
      %157 = arith.addf %153, %156 : vector<8x32xf32>
      %c0_87 = arith.constant 0 : index
      %c96_88 = arith.constant 96 : index
      %158 = vector.load %arg19[%c0_87, %c96_88] : memref<8x128xf32, #tpu.memory_space<vmem>>, vector<8x32xf32>
      tpu.vector_store %arg19[%c0_87, %c96_88], %157 {strides = array<i32>} : memref<8x128xf32, #tpu.memory_space<vmem>>, vector<8x32xf32>,
      %c0_89 = arith.constant 0 : index
      %c3_90 = arith.constant 3 : index
      %159 = vector.load %arg17[%c0_89, %c3_90] : memref<8x4xf32, #tpu.memory_space<vmem>>, vector<8x1xf32>
      tpu.vector_store %arg17[%c0_89, %c3_90], %139 {strides = array<i32>} : memref<8x4xf32, #tpu.memory_space<vmem>>, vector<8x1xf32>,
    } else {
    }
    %c1_i32 = arith.constant 1 : i32
    %9 = arith.cmpi eq, %arg2, %c1_i32 : i32
    %10 = arith.extui %9 : i1 to i32
    %c0_i32_3 = arith.constant 0 : i32
    %11 = arith.cmpi ne, %10, %c0_i32_3 : i32
    scf.if %11 {
      %c0 = arith.constant 0 : index
      %c0_4 = arith.constant 0 : index
      %12 = vector.load %arg18[%c0, %c0_4] : memref<8x4xf32, #tpu.memory_space<vmem>>, vector<8x4xf32>
      %13 = tpu.reciprocal %12 {approx = true} : vector<8x4xf32> -> vector<8x4xf32>
      %c0_5 = arith.constant 0 : index
      %c0_6 = arith.constant 0 : index
      %14 = vector.load %arg19[%c0_5, %c0_6] : memref<8x128xf32, #tpu.memory_space<vmem>>, vector<8x32xf32>
      %15 = vector.extract_strided_slice %13 {offsets = [0, 0], sizes = [8, 1], strides = [1, 1]} : vector<8x4xf32> to vector<8x1xf32>
      %16 = vector.broadcast %15 : vector<8x1xf32> to vector<8x32xf32>
      %17 = arith.mulf %14, %16 : vector<8x32xf32>
      %c0_7 = arith.constant 0 : index
      %c0_8 = arith.constant 0 : index
      %18 = vector.load %arg19[%c0_7, %c0_8] : memref<8x128xf32, #tpu.memory_space<vmem>>, vector<8x32xf32>
      tpu.vector_store %arg19[%c0_7, %c0_8], %17 {strides = array<i32>} : memref<8x128xf32, #tpu.memory_space<vmem>>, vector<8x32xf32>,
      %c0_9 = arith.constant 0 : index
      %c32 = arith.constant 32 : index
      %19 = vector.load %arg19[%c0_9, %c32] : memref<8x128xf32, #tpu.memory_space<vmem>>, vector<8x32xf32>
      %20 = vector.extract_strided_slice %13 {offsets = [0, 1], sizes = [8, 1], strides = [1, 1]} : vector<8x4xf32> to vector<8x1xf32>
      %21 = vector.broadcast %20 : vector<8x1xf32> to vector<8x32xf32>
      %22 = arith.mulf %19, %21 : vector<8x32xf32>
      %c0_10 = arith.constant 0 : index
      %c32_11 = arith.constant 32 : index
      %23 = vector.load %arg19[%c0_10, %c32_11] : memref<8x128xf32, #tpu.memory_space<vmem>>, vector<8x32xf32>
      tpu.vector_store %arg19[%c0_10, %c32_11], %22 {strides = array<i32>} : memref<8x128xf32, #tpu.memory_space<vmem>>, vector<8x32xf32>,
      %c0_12 = arith.constant 0 : index
      %c64 = arith.constant 64 : index
      %24 = vector.load %arg19[%c0_12, %c64] : memref<8x128xf32, #tpu.memory_space<vmem>>, vector<8x32xf32>
      %25 = vector.extract_strided_slice %13 {offsets = [0, 2], sizes = [8, 1], strides = [1, 1]} : vector<8x4xf32> to vector<8x1xf32>
      %26 = vector.broadcast %25 : vector<8x1xf32> to vector<8x32xf32>
      %27 = arith.mulf %24, %26 : vector<8x32xf32>
      %c0_13 = arith.constant 0 : index
      %c64_14 = arith.constant 64 : index
      %28 = vector.load %arg19[%c0_13, %c64_14] : memref<8x128xf32, #tpu.memory_space<vmem>>, vector<8x32xf32>
      tpu.vector_store %arg19[%c0_13, %c64_14], %27 {strides = array<i32>} : memref<8x128xf32, #tpu.memory_space<vmem>>, vector<8x32xf32>,
      %c0_15 = arith.constant 0 : index
      %c96 = arith.constant 96 : index
      %29 = vector.load %arg19[%c0_15, %c96] : memref<8x128xf32, #tpu.memory_space<vmem>>, vector<8x32xf32>
      %30 = vector.extract_strided_slice %13 {offsets = [0, 3], sizes = [8, 1], strides = [1, 1]} : vector<8x4xf32> to vector<8x1xf32>
      %31 = vector.broadcast %30 : vector<8x1xf32> to vector<8x32xf32>
      %32 = arith.mulf %29, %31 : vector<8x32xf32>
      %c0_16 = arith.constant 0 : index
      %c96_17 = arith.constant 96 : index
      %33 = vector.load %arg19[%c0_16, %c96_17] : memref<8x128xf32, #tpu.memory_space<vmem>>, vector<8x32xf32>
      tpu.vector_store %arg19[%c0_16, %c96_17], %32 {strides = array<i32>} : memref<8x128xf32, #tpu.memory_space<vmem>>, vector<8x32xf32>,
      %c0_18 = arith.constant 0 : index
      %c0_19 = arith.constant 0 : index
      %34 = vector.load %arg19[%c0_18, %c0_19] : memref<8x128xf32, #tpu.memory_space<vmem>>, vector<8x128xf32>
      %35 = arith.truncf %34 : vector<8x128xf32> to vector<8x128xbf16>
      %c0_20 = arith.constant 0 : index
      %c0_21 = arith.constant 0 : index
      %36 = vector.load %arg11[%c0_20, %c0_21] : memref<128x128xbf16, #tpu.memory_space<vmem>>, vector<128x128xbf16>
      %cst = arith.constant dense<0.000000e+00> : vector<8x128xf32>
      %37 = tpu.matmul %35, %36, %cst {dimension_numbers = #tpu.dot_dimension_numbers<[1], [0], [0], [1], [0, 0, 1, 1], [], []>} : vector<8x128xbf16>, vector<128x128xbf16>, vector<8x128xf32> -> vector<8x128xf32>
      %c0_22 = arith.constant 0 : index
      %c0_23 = arith.constant 0 : index
      %38 = vector.load %arg12[%c0_22, %c0_23] : memref<1x128xf32, #tpu.memory_space<vmem>>, vector<1x128xf32>
      %39 = vector.broadcast %38 : vector<1x128xf32> to vector<8x128xf32>
      %40 = arith.addf %37, %39 : vector<8x128xf32>
      %c0_24 = arith.constant 0 : index
      %c0_25 = arith.constant 0 : index
      %c0_26 = arith.constant 0 : index
      %41 = vector.load %arg3[%c0_24, %c0_25, %c0_26] : memref<1x8x128xf32, #tpu.memory_space<vmem>>, vector<1x8x128xf32>
      %42 = vector.shape_cast %41 : vector<1x8x128xf32> to vector<8x128xf32>
      %43 = arith.addf %42, %40 : vector<8x128xf32>
      %cst_27 = arith.constant dense<0.000000e+00> : vector<8xf32>
      %44 = vector.multi_reduction <add>, %43, %cst_27 [1] : vector<8x128xf32> to vector<8xf32>
      %45 = vector.shape_cast %44 : vector<8xf32> to vector<8x1xf32>
      %cst_28 = arith.constant 1.280000e+02 : f32
      %46 = vector.broadcast %cst_28 : f32 to vector<8x1xf32>
      %47 = arith.divf %45, %46 : vector<8x1xf32>
      %48 = vector.broadcast %47 : vector<8x1xf32> to vector<8x128xf32>
      %49 = arith.subf %43, %48 : vector<8x128xf32>
      %50 = arith.mulf %49, %49 : vector<8x128xf32>
      %cst_29 = arith.constant dense<0.000000e+00> : vector<8xf32>
      %51 = vector.multi_reduction <add>, %50, %cst_29 [1] : vector<8x128xf32> to vector<8xf32>
      %52 = vector.shape_cast %51 : vector<8xf32> to vector<8x1xf32>
      %cst_30 = arith.constant 0.00787401571 : f32
      %53 = vector.broadcast %cst_30 : f32 to vector<8x1xf32>
      %54 = arith.mulf %52, %53 : vector<8x1xf32>
      %55 = math.sqrt %54 : vector<8x1xf32>
      %c0_31 = arith.constant 0 : index
      %c0_32 = arith.constant 0 : index
      %56 = vector.load %arg13[%c0_31, %c0_32] : memref<1x128xf32, #tpu.memory_space<vmem>>, vector<1x128xf32>
      %57 = vector.broadcast %56 : vector<1x128xf32> to vector<8x128xf32>
      %58 = arith.mulf %57, %49 : vector<8x128xf32>
      %cst_33 = arith.constant 9.99999997E-7 : f32
      %59 = vector.broadcast %cst_33 : f32 to vector<8x1xf32>
      %60 = arith.addf %55, %59 : vector<8x1xf32>
      %61 = tpu.reciprocal %60 {approx = true} : vector<8x1xf32> -> vector<8x1xf32>
      %62 = vector.broadcast %61 : vector<8x1xf32> to vector<8x128xf32>
      %63 = arith.mulf %58, %62 : vector<8x128xf32>
      %c0_34 = arith.constant 0 : index
      %c0_35 = arith.constant 0 : index
      %64 = vector.load %arg14[%c0_34, %c0_35] : memref<1x128xf32, #tpu.memory_space<vmem>>, vector<1x128xf32>
      %65 = vector.broadcast %64 : vector<1x128xf32> to vector<8x128xf32>
      %66 = arith.addf %63, %65 : vector<8x128xf32>
      %c0_36 = arith.constant 0 : index
      %c0_37 = arith.constant 0 : index
      %c0_38 = arith.constant 0 : index
      %67 = vector.load %arg15[%c0_36, %c0_37, %c0_38] : memref<1x8x128xf32, #tpu.memory_space<vmem>>, vector<1x8x128xf32>
      %68 = vector.shape_cast %67 : vector<1x8x128xf32> to vector<8x128xf32>
      %69 = vector.shape_cast %66 : vector<8x128xf32> to vector<1x8x128xf32>
      tpu.vector_store %arg15[%c0_36, %c0_37, %c0_38], %69 {strides = array<i32>} : memref<1x8x128xf32, #tpu.memory_space<vmem>>, vector<1x8x128xf32>,
    } else {
    }
    return
  }
  func.func @transform_0(%arg0: i32, %arg1: i32, %arg2: i32) -> (i32, i32, i32) {
    %c0_i32 = arith.constant 0 : i32
    %c0_i32_0 = arith.constant 0 : i32
    return %arg0, %arg1, %c0_i32 : i32, i32, i32
  }
  func.func @transform_1(%arg0: i32, %arg1: i32, %arg2: i32) -> (i32, i32, i32) {
    %c0_i32 = arith.constant 0 : i32
    %c0_i32_0 = arith.constant 0 : i32
    return %arg0, %arg2, %c0_i32 : i32, i32, i32
  }
  func.func @transform_2(%arg0: i32, %arg1: i32, %arg2: i32) -> (i32, i32) {
    %c0_i32 = arith.constant 0 : i32
    %c0_i32_0 = arith.constant 0 : i32
    %c0_i32_1 = arith.constant 0 : i32
    return %c0_i32, %c0_i32_0 : i32, i32
  }
  func.func @transform_3(%arg0: i32, %arg1: i32, %arg2: i32) -> (i32, i32) {
    %c0_i32 = arith.constant 0 : i32
    %c0_i32_0 = arith.constant 0 : i32
    %c0_i32_1 = arith.constant 0 : i32
    return %c0_i32, %c0_i32_0 : i32, i32
  }
  func.func @transform_4(%arg0: i32, %arg1: i32, %arg2: i32) -> (i32, i32) {
    %c0_i32 = arith.constant 0 : i32
    %c0_i32_0 = arith.constant 0 : i32
    %c0_i32_1 = arith.constant 0 : i32
    return %c0_i32, %c0_i32_0 : i32, i32
  }
  func.func @transform_5(%arg0: i32, %arg1: i32, %arg2: i32) -> (i32, i32) {
    %c0_i32 = arith.constant 0 : i32
    %c0_i32_0 = arith.constant 0 : i32
    %c0_i32_1 = arith.constant 0 : i32
    return %c0_i32, %c0_i32_0 : i32, i32
  }
  func.func @transform_6(%arg0: i32, %arg1: i32, %arg2: i32) -> (i32, i32) {
    %c0_i32 = arith.constant 0 : i32
    %c0_i32_0 = arith.constant 0 : i32
    %c0_i32_1 = arith.constant 0 : i32
    return %c0_i32, %c0_i32_0 : i32, i32
  }
  func.func @transform_7(%arg0: i32, %arg1: i32, %arg2: i32) -> (i32, i32) {
    %c0_i32 = arith.constant 0 : i32
    %c0_i32_0 = arith.constant 0 : i32
    %c0_i32_1 = arith.constant 0 : i32
    return %c0_i32, %c0_i32_0 : i32, i32
  }
  func.func @transform_8(%arg0: i32, %arg1: i32, %arg2: i32) -> (i32, i32) {
    %c0_i32 = arith.constant 0 : i32
    %c0_i32_0 = arith.constant 0 : i32
    %c0_i32_1 = arith.constant 0 : i32
    return %c0_i32, %c0_i32_0 : i32, i32
  }
  func.func @transform_9(%arg0: i32, %arg1: i32, %arg2: i32) -> (i32, i32) {
    %c0_i32 = arith.constant 0 : i32
    %c0_i32_0 = arith.constant 0 : i32
    %c0_i32_1 = arith.constant 0 : i32
    return %c0_i32, %c0_i32_0 : i32, i32
  }
  func.func @transform_10(%arg0: i32, %arg1: i32, %arg2: i32) -> (i32, i32) {
    %c0_i32 = arith.constant 0 : i32
    %c0_i32_0 = arith.constant 0 : i32
    %c0_i32_1 = arith.constant 0 : i32
    return %c0_i32, %c0_i32_0 : i32, i32
  }
  func.func @transform_11(%arg0: i32, %arg1: i32, %arg2: i32) -> (i32, i32) {
    %c0_i32 = arith.constant 0 : i32
    %c0_i32_0 = arith.constant 0 : i32
    %c0_i32_1 = arith.constant 0 : i32
    return %c0_i32, %c0_i32_0 : i32, i32
  }
  func.func @transform_12(%arg0: i32, %arg1: i32, %arg2: i32) -> (i32, i32, i32) {
    %c0_i32 = arith.constant 0 : i32
    %c0_i32_0 = arith.constant 0 : i32
    return %arg0, %arg1, %c0_i32 : i32, i32, i32
  }
}

</mosaic_0001>

<llo_original>
// kernel: tpu_custom_call.1
$region0: #{tpu_custom_call.1}
  #allocation0 [shape = 'u32[]', space=smem, size = 0x4, offset = 0x4, fixed_abs, tag = 'smem constant byte address 0x4 - core index']
  #allocation1 [shape = 'u32[144,128]{1,0:T(1,128)}', space=vmem, size = 0x12000, scoped, tag = 'internal scratch']
  #allocation2 [shape = 'bf16[8,128]{1,0:T(8,128)(2,1)}', space=vmem, size = 0x800, scoped, tag = 'scratch operand']
  #allocation3 [shape = 'f32[8,4]{1,0:T(8,128)}', space=vmem, size = 0x1000, scoped, tag = 'scratch operand']
  #allocation4 [shape = 'f32[8,4]{1,0:T(8,128)}', space=vmem, size = 0x1000, scoped, tag = 'scratch operand']
  #allocation5 [shape = 'f32[8,128]{1,0:T(8,128)}', space=vmem, size = 0x1000, scoped, tag = 'scratch operand']
  %s0 = inlined_call_operand.hbm [shape: f32[2,16,128], index: 0, kind: input, shape index: {}]
  %s1 = inlined_call_operand.hbm [shape: f32[2,16,128], index: 1, kind: input, shape index: {}]
  %s2 = inlined_call_operand.hbm [shape: bf16[128,128], index: 2, kind: input, shape index: {}]
  %s3 = inlined_call_operand.vmem [shape: f32[1,128], index: 3, kind: input, shape index: {}]
  %s4 = inlined_call_operand.hbm [shape: bf16[128,128], index: 4, kind: input, shape index: {}]
  %s5 = inlined_call_operand.vmem [shape: f32[1,128], index: 5, kind: input, shape index: {}]
  %s6 = inlined_call_operand.hbm [shape: bf16[128,128], index: 6, kind: input, shape index: {}]
  %s7 = inlined_call_operand.vmem [shape: f32[1,128], index: 7, kind: input, shape index: {}]
  %s8 = inlined_call_operand.hbm [shape: bf16[128,128], index: 8, kind: input, shape index: {}]
  %s9 = inlined_call_operand.vmem [shape: f32[1,128], index: 9, kind: input, shape index: {}]
  %s10 = inlined_call_operand.vmem [shape: f32[1,128], index: 10, kind: input, shape index: {}]
  %s11 = inlined_call_operand.vmem [shape: f32[1,128], index: 11, kind: input, shape index: {}]
  %s12 = inlined_call_operand.hbm [shape: f32[2,16,128], index: 12, kind: output, shape index: {}]
  %s13 = sld [smem:[#allocation0]]
  $region117: #{tpu_custom_call.1} parent=0
    _
  %s15 = ssub.s32 1, %s13
  %s16 = scalar_select 0, %s15, %s13
  $region1: #{tpu_custom_call.1} parent=0
    #allocation6 [shape = 'u8[8192]{0}', space=vmem, size = 0x2000, scoped, tag = 'input window, operand 0']
    #allocation7 [shape = 's32[2]{0}', space=sflag, size = 0x8, scoped, tag = 'scoped memory for tpu_custom_call.1']
    #allocation8 [shape = 's32[2]{0}', space=sflag, size = 0x8, scoped, tag = 'scoped memory for tpu_custom_call.1']
    #allocation9 [shape = 'u8[8192]{0}', space=vmem, size = 0x2000, scoped, tag = 'input window, operand 1']
    #allocation10 [shape = 's32[2]{0}', space=sflag, size = 0x8, scoped, tag = 'scoped memory for tpu_custom_call.1']
    #allocation11 [shape = 'u8[32768]{0}', space=vmem, size = 0x8000, scoped, tag = 'input window, operand 2, single buffered']
    #allocation12 [shape = 'u8[32768]{0}', space=vmem, size = 0x8000, scoped, tag = 'input window, operand 4, single buffered']
    #allocation13 [shape = 's32[1]{0}', space=sflag, size = 0x4, scoped, tag = 'scoped memory for tpu_custom_call.1']
    #allocation14 [shape = 'u8[32768]{0}', space=vmem, size = 0x8000, scoped, tag = 'input window, operand 6, single buffered']
    #allocation15 [shape = 'u8[32768]{0}', space=vmem, size = 0x8000, scoped, tag = 'input window, operand 8, single buffered']
    #allocation16 [shape = 's32[1]{0}', space=sflag, size = 0x4, scoped, tag = 'scoped memory for tpu_custom_call.1']
    #allocation17 [shape = 'u8[8192]{0}', space=vmem, size = 0x2000, scoped, tag = 'output window, operand 0']
    %17 = vsyncpa [#allocation7], 0
    %s18 = scalar_lea.sflag [#allocation7], 1
    %19 = vsyncpa %s18, 0
    %20 = vsyncpa [#allocation10], 0
    %s21 = scalar_lea.sflag [#allocation10], 1
    %22 = vsyncpa %s21, 0
    %23 = vsyncpa [#allocation13], 0
    %24 = vsyncpa [#allocation16], 0
    %25 = vsyncpa [#allocation8], 0
    %s26 = scalar_lea.sflag [#allocation8], 1
    %27 = vsyncpa %s26, 0
    loop: start=0, step=1, limit=10
    $region2: #{tpu_custom_call.1} parent=1 // loop_pre_header
      _
    $region3: #{tpu_custom_call.1} parent=1 // loop_header
      %s29 = sphi 0, %s33
      %p30 = scmp.ge.s32.totalorder %s29, 10
      %s36 = sphi 0, %s55
      %s37 = sphi 0, %s51
      %s38 = sphi 0, %s47
      %s39 = sphi 0, %s36
      %s40 = sphi 0, %s37
      %s41 = sphi 0, %s38
      %s42 = sphi 0, %s39
      %s43 = sphi 0, %s40
      %s44 = sphi 0, %s41
      %s60 = sphi 0, %s62
      %s63 = sphi 0, %s60
      %s64 = sphi 0, %s63
      %s80 = sphi 0, %s64
      %s88 = sphi 0, %s90
      %s91 = sphi 0, %s88
      %s92 = sphi 0, %s91
      %s108 = sphi 0, %s92
      %s112 = sphi 0, %s112
      %s114 = sphi 0, %s112
      %s115 = sphi 0, %s114
      %s129 = sphi 0, %s115
      %s133 = sphi 0, %s133
      %s135 = sphi 0, %s133
      %s136 = sphi 0, %s135
      %s150 = sphi 0, %s136
      %s154 = sphi 0, %s154
      %s156 = sphi 0, %s154
      %s157 = sphi 0, %s156
      %s171 = sphi 0, %s157
      %s175 = sphi 0, %s175
      %s177 = sphi 0, %s175
      %s178 = sphi 0, %s177
      %s192 = sphi 0, %s178
      %s196 = sphi 0, %s196
      %s198 = sphi 0, %s196
      %s199 = sphi 0, %s198
      %s213 = sphi 0, %s199
      %s217 = sphi 0, %s217
      %s219 = sphi 0, %s217
      %s220 = sphi 0, %s219
      %s234 = sphi 0, %s220
      %s238 = sphi 0, %s238
      %s240 = sphi 0, %s238
      %s241 = sphi 0, %s240
      %s255 = sphi 0, %s241
      %s259 = sphi 0, %s259
      %s261 = sphi 0, %s259
      %s262 = sphi 0, %s261
      %s276 = sphi 0, %s262
      %s280 = sphi 0, %s280
      %s282 = sphi 0, %s280
      %s283 = sphi 0, %s282
      %s297 = sphi 0, %s283
      %s301 = sphi 0, %s301
      %s303 = sphi 0, %s301
      %s304 = sphi 0, %s303
      %s318 = sphi 0, %s304
      %s326 = sphi 0, %s328
      %s329 = sphi 0, %s326
      %s330 = sphi 0, %s329
      %s346 = sphi 0, %s330
    $region4: #{tpu_custom_call.1} parent=1 // loop_header_branch
      %32 = sbr.rel (%p30) target = $region8
    $region5: #{tpu_custom_call.1} parent=1 // loop_body
      %s34 = ssub.s32 %s29, 1
      %s35 = ssub.s32 %s29, 2
      %s45 = sadd.s32 1, %s38
      %p46 = scmp.ge.s32.totalorder %s45, 2
      %s47 = scalar_select %p46, 0, %s45
      %s48 = sadd.s32 1, %s37
      %s49 = scalar_select %p46, %s48, %s37
      %p50 = scmp.ge.s32.totalorder %s49, 2
      %s51 = scalar_select %p50, 0, %s49
      %s52 = sadd.s32 1, %s36
      %s53 = scalar_select %p50, %s52, %s36
      %p54 = scmp.ge.s32.totalorder %s53, 2
      %s55 = scalar_select %p54, 0, %s53
      %s56 = ssub.s32 %s36, %s55
      %s57 = ssub.s32 %s37, %s51
      %s58 = sor.u32 %s56, %s57
      %p59 = scmp.eq.s32.totalorder %s58, 0
      %s61 = sadd.s32 %s60, 1
      %s62 = scalar_select %p59, %s60, %s61
      %p65 = pneg %p59
      %p66 = scmp.eq.s32.totalorder %s29, 7
      %p67 = por %p65, %p66
      %p68 = scmp.ne.s32.totalorder %s60, %s63
      %p69 = scmp.eq.s32.totalorder %s29, 0
      %p70 = por %p68, %p69
      %p71 = scmp.ne.s32.totalorder %s60, %s63
      %p72 = scmp.eq.s32.totalorder %s34, 7
      %p73 = por %p71, %p72
      %p74 = scmp.ne.s32.totalorder %s63, %s64
      %p75 = scmp.eq.s32.totalorder %s34, 0
      %p76 = por %p74, %p75
      %p77 = scmp.ne.s32.totalorder %s63, %s64
      %p78 = scmp.eq.s32.totalorder %s35, 7
      %p79 = por %p77, %p78
      %p81 = scmp.ne.s32.totalorder %s64, %s80
      %p82 = scmp.eq.s32.totalorder %s35, 0
      %p83 = por %p81, %p82
      %s84 = ssub.s32 %s36, %s55
      %s85 = ssub.s32 %s38, %s47
      %s86 = sor.u32 %s84, %s85
      %p87 = scmp.eq.s32.totalorder %s86, 0
      %s89 = sadd.s32 %s88, 1
      %s90 = scalar_select %p87, %s88, %s89
      %p93 = pneg %p87
      %p94 = scmp.eq.s32.totalorder %s29, 7
      %p95 = por %p93, %p94
      %p96 = scmp.ne.s32.totalorder %s88, %s91
      %p97 = scmp.eq.s32.totalorder %s29, 0
      %p98 = por %p96, %p97
      %p99 = scmp.ne.s32.totalorder %s88, %s91
      %p100 = scmp.eq.s32.totalorder %s34, 7
      %p101 = por %p99, %p100
      %p102 = scmp.ne.s32.totalorder %s91, %s92
      %p103 = scmp.eq.s32.totalorder %s34, 0
      %p104 = por %p102, %p103
      %p105 = scmp.ne.s32.totalorder %s91, %s92
      %p106 = scmp.eq.s32.totalorder %s35, 7
      %p107 = por %p105, %p106
      %p109 = scmp.ne.s32.totalorder %s92, %s108
      %p110 = scmp.eq.s32.totalorder %s35, 0
      %p111 = por %p109, %p110
      %s113 = sadd.s32 %s112, 1
      %p116 = scmp.eq.s32.totalorder %s29, 7
      %p117 = scmp.ne.s32.totalorder %s112, %s114
      %p118 = scmp.eq.s32.totalorder %s29, 0
      %p119 = por %p117, %p118
      %p120 = scmp.ne.s32.totalorder %s112, %s114
      %p121 = scmp.eq.s32.totalorder %s34, 7
      %p122 = por %p120, %p121
      %p123 = scmp.ne.s32.totalorder %s114, %s115
      %p124 = scmp.eq.s32.totalorder %s34, 0
      %p125 = por %p123, %p124
      %p126 = scmp.ne.s32.totalorder %s114, %s115
      %p127 = scmp.eq.s32.totalorder %s35, 7
      %p128 = por %p126, %p127
      %p130 = scmp.ne.s32.totalorder %s115, %s129
      %p131 = scmp.eq.s32.totalorder %s35, 0
      %p132 = por %p130, %p131
      %s134 = sadd.s32 %s133, 1
      %p137 = scmp.eq.s32.totalorder %s29, 7
      %p138 = scmp.ne.s32.totalorder %s133, %s135
      %p139 = scmp.eq.s32.totalorder %s29, 0
      %p140 = por %p138, %p139
      %p141 = scmp.ne.s32.totalorder %s133, %s135
      %p142 = scmp.eq.s32.totalorder %s34, 7
      %p143 = por %p141, %p142
      %p144 = scmp.ne.s32.totalorder %s135, %s136
      %p145 = scmp.eq.s32.totalorder %s34, 0
      %p146 = por %p144, %p145
      %p147 = scmp.ne.s32.totalorder %s135, %s136
      %p148 = scmp.eq.s32.totalorder %s35, 7
      %p149 = por %p147, %p148
      %p151 = scmp.ne.s32.totalorder %s136, %s150
      %p152 = scmp.eq.s32.totalorder %s35, 0
      %p153 = por %p151, %p152
      %s155 = sadd.s32 %s154, 1
      %p158 = scmp.eq.s32.totalorder %s29, 7
      %p159 = scmp.ne.s32.totalorder %s154, %s156
      %p160 = scmp.eq.s32.totalorder %s29, 0
      %p161 = por %p159, %p160
      %p162 = scmp.ne.s32.totalorder %s154, %s156
      %p163 = scmp.eq.s32.totalorder %s34, 7
      %p164 = por %p162, %p163
      %p165 = scmp.ne.s32.totalorder %s156, %s157
      %p166 = scmp.eq.s32.totalorder %s34, 0
      %p167 = por %p165, %p166
      %p168 = scmp.ne.s32.totalorder %s156, %s157
      %p169 = scmp.eq.s32.totalorder %s35, 7
      %p170 = por %p168, %p169
      %p172 = scmp.ne.s32.totalorder %s157, %s171
      %p173 = scmp.eq.s32.totalorder %s35, 0
      %p174 = por %p172, %p173
      %s176 = sadd.s32 %s175, 1
      %p179 = scmp.eq.s32.totalorder %s29, 7
      %p180 = scmp.ne.s32.totalorder %s175, %s177
      %p181 = scmp.eq.s32.totalorder %s29, 0
      %p182 = por %p180, %p181
      %p183 = scmp.ne.s32.totalorder %s175, %s177
      %p184 = scmp.eq.s32.totalorder %s34, 7
      %p185 = por %p183, %p184
      %p186 = scmp.ne.s32.totalorder %s177, %s178
      %p187 = scmp.eq.s32.totalorder %s34, 0
      %p188 = por %p186, %p187
      %p189 = scmp.ne.s32.totalorder %s177, %s178
      %p190 = scmp.eq.s32.totalorder %s35, 7
      %p191 = por %p189, %p190
      %p193 = scmp.ne.s32.totalorder %s178, %s192
      %p194 = scmp.eq.s32.totalorder %s35, 0
      %p195 = por %p193, %p194
      %s197 = sadd.s32 %s196, 1
      %p200 = scmp.eq.s32.totalorder %s29, 7
      %p201 = scmp.ne.s32.totalorder %s196, %s198
      %p202 = scmp.eq.s32.totalorder %s29, 0
      %p203 = por %p201, %p202
      %p204 = scmp.ne.s32.totalorder %s196, %s198
      %p205 = scmp.eq.s32.totalorder %s34, 7
      %p206 = por %p204, %p205
      %p207 = scmp.ne.s32.totalorder %s198, %s199
      %p208 = scmp.eq.s32.totalorder %s34, 0
      %p209 = por %p207, %p208
      %p210 = scmp.ne.s32.totalorder %s198, %s199
      %p211 = scmp.eq.s32.totalorder %s35, 7
      %p212 = por %p210, %p211
      %p214 = scmp.ne.s32.totalorder %s199, %s213
      %p215 = scmp.eq.s32.totalorder %s35, 0
      %p216 = por %p214, %p215
      %s218 = sadd.s32 %s217, 1
      %p221 = scmp.eq.s32.totalorder %s29, 7
      %p222 = scmp.ne.s32.totalorder %s217, %s219
      %p223 = scmp.eq.s32.totalorder %s29, 0
      %p224 = por %p222, %p223
      %p225 = scmp.ne.s32.totalorder %s217, %s219
      %p226 = scmp.eq.s32.totalorder %s34, 7
      %p227 = por %p225, %p226
      %p228 = scmp.ne.s32.totalorder %s219, %s220
      %p229 = scmp.eq.s32.totalorder %s34, 0
      %p230 = por %p228, %p229
      %p231 = scmp.ne.s32.totalorder %s219, %s220
      %p232 = scmp.eq.s32.totalorder %s35, 7
      %p233 = por %p231, %p232
      %p235 = scmp.ne.s32.totalorder %s220, %s234
      %p236 = scmp.eq.s32.totalorder %s35, 0
      %p237 = por %p235, %p236
      %s239 = sadd.s32 %s238, 1
      %p242 = scmp.eq.s32.totalorder %s29, 7
      %p243 = scmp.ne.s32.totalorder %s238, %s240
      %p244 = scmp.eq.s32.totalorder %s29, 0
      %p245 = por %p243, %p244
      %p246 = scmp.ne.s32.totalorder %s238, %s240
      %p247 = scmp.eq.s32.totalorder %s34, 7
      %p248 = por %p246, %p247
      %p249 = scmp.ne.s32.totalorder %s240, %s241
      %p250 = scmp.eq.s32.totalorder %s34, 0
      %p251 = por %p249, %p250
      %p252 = scmp.ne.s32.totalorder %s240, %s241
      %p253 = scmp.eq.s32.totalorder %s35, 7
      %p254 = por %p252, %p253
      %p256 = scmp.ne.s32.totalorder %s241, %s255
      %p257 = scmp.eq.s32.totalorder %s35, 0
      %p258 = por %p256, %p257
      %s260 = sadd.s32 %s259, 1
      %p263 = scmp.eq.s32.totalorder %s29, 7
      %p264 = scmp.ne.s32.totalorder %s259, %s261
      %p265 = scmp.eq.s32.totalorder %s29, 0
      %p266 = por %p264, %p265
      %p267 = scmp.ne.s32.totalorder %s259, %s261
      %p268 = scmp.eq.s32.totalorder %s34, 7
      %p269 = por %p267, %p268
      %p270 = scmp.ne.s32.totalorder %s261, %s262
      %p271 = scmp.eq.s32.totalorder %s34, 0
      %p272 = por %p270, %p271
      %p273 = scmp.ne.s32.totalorder %s261, %s262
      %p274 = scmp.eq.s32.totalorder %s35, 7
      %p275 = por %p273, %p274
      %p277 = scmp.ne.s32.totalorder %s262, %s276
      %p278 = scmp.eq.s32.totalorder %s35, 0
      %p279 = por %p277, %p278
      %s281 = sadd.s32 %s280, 1
      %p284 = scmp.eq.s32.totalorder %s29, 7
      %p285 = scmp.ne.s32.totalorder %s280, %s282
      %p286 = scmp.eq.s32.totalorder %s29, 0
      %p287 = por %p285, %p286
      %p288 = scmp.ne.s32.totalorder %s280, %s282
      %p289 = scmp.eq.s32.totalorder %s34, 7
      %p290 = por %p288, %p289
      %p291 = scmp.ne.s32.totalorder %s282, %s283
      %p292 = scmp.eq.s32.totalorder %s34, 0
      %p293 = por %p291, %p292
      %p294 = scmp.ne.s32.totalorder %s282, %s283
      %p295 = scmp.eq.s32.totalorder %s35, 7
      %p296 = por %p294, %p295
      %p298 = scmp.ne.s32.totalorder %s283, %s297
      %p299 = scmp.eq.s32.totalorder %s35, 0
      %p300 = por %p298, %p299
      %s302 = sadd.s32 %s301, 1
      %p305 = scmp.eq.s32.totalorder %s29, 7
      %p306 = scmp.ne.s32.totalorder %s301, %s303
      %p307 = scmp.eq.s32.totalorder %s29, 0
      %p308 = por %p306, %p307
      %p309 = scmp.ne.s32.totalorder %s301, %s303
      %p310 = scmp.eq.s32.totalorder %s34, 7
      %p311 = por %p309, %p310
      %p312 = scmp.ne.s32.totalorder %s303, %s304
      %p313 = scmp.eq.s32.totalorder %s34, 0
      %p314 = por %p312, %p313
      %p315 = scmp.ne.s32.totalorder %s303, %s304
      %p316 = scmp.eq.s32.totalorder %s35, 7
      %p317 = por %p315, %p316
      %p319 = scmp.ne.s32.totalorder %s304, %s318
      %p320 = scmp.eq.s32.totalorder %s35, 0
      %p321 = por %p319, %p320
      %s322 = ssub.s32 %s36, %s55
      %s323 = ssub.s32 %s37, %s51
      %s324 = sor.u32 %s322, %s323
      %p325 = scmp.eq.s32.totalorder %s324, 0
      %s327 = sadd.s32 %s326, 1
      %s328 = scalar_select %p325, %s326, %s327
      %p331 = pneg %p325
      %p332 = scmp.eq.s32.totalorder %s29, 7
      %p333 = por %p331, %p332
      %p334 = scmp.ne.s32.totalorder %s326, %s329
      %p335 = scmp.eq.s32.totalorder %s29, 0
      %p336 = por %p334, %p335
      %p337 = scmp.ne.s32.totalorder %s326, %s329
      %p338 = scmp.eq.s32.totalorder %s34, 7
      %p339 = por %p337, %p338
      %p340 = scmp.ne.s32.totalorder %s329, %s330
      %p341 = scmp.eq.s32.totalorder %s34, 0
      %p342 = por %p340, %p341
      %p343 = scmp.ne.s32.totalorder %s329, %s330
      %p344 = scmp.eq.s32.totalorder %s35, 7
      %p345 = por %p343, %p344
      %p347 = scmp.ne.s32.totalorder %s330, %s346
      %p348 = scmp.eq.s32.totalorder %s35, 0
      %p349 = por %p347, %p348
      %p350 = scmp.le.s32.totalorder 1, %s29
      %p351 = scmp.lt.s32.totalorder %s29, 9
      %p352 = pnand %p350, %p351
      %p353 = pneg %p352
      // Predicated region
      $region9: #{tpu_custom_call.1} parent=5 // pred_check
        _
      $region10: #{tpu_custom_call.1} parent=5 // pred_check_branch
        %355 = sbr.rel (%p352) target = $region12
      $region11: #{tpu_custom_call.1} parent=5 // pred_region
        %s356 = ssub.s32 %s29, 1
        // Predicated region
        $region13: #{tpu_custom_call.1} parent=11 // pred_check
          %p357 = pneg %p125
        $region14: #{tpu_custom_call.1} parent=11 // pred_check_branch
          %359 = sbr.rel (%p357) target = $region16
        $region15: #{tpu_custom_call.1} parent=11 // pred_region
          %s361 = ssub.s32 1024, 1024
          %362 = vsyncadd [#allocation10], %s361
          %s363 = sshll.u32 [#allocation11], 4
          %s364 = int_to_ptr.vmem [resolvable:$true] %s363
          %369 = dma.hbm_to_vmem [thread:$0]  %s2, 1024, %s364, [#allocation10], 64, 64, 4
        $region16: #{tpu_custom_call.1} parent=11 // pred_fallthru
          _
        // Predicated region
        $region17: #{tpu_custom_call.1} parent=11 // pred_check
          %p370 = pneg %p146
        $region18: #{tpu_custom_call.1} parent=11 // pred_check_branch
          %372 = sbr.rel (%p370) target = $region20
        $region19: #{tpu_custom_call.1} parent=11 // pred_region
          _
        $region20: #{tpu_custom_call.1} parent=11 // pred_fallthru
          _
        // Predicated region
        $region21: #{tpu_custom_call.1} parent=11 // pred_check
          %p373 = pneg %p167
        $region22: #{tpu_custom_call.1} parent=11 // pred_check_branch
          %375 = sbr.rel (%p373) target = $region24
        $region23: #{tpu_custom_call.1} parent=11 // pred_region
          %s377 = ssub.s32 1024, 1024
          %378 = vsyncadd [#allocation13], %s377
          %s379 = sshll.u32 [#allocation12], 4
          %s380 = int_to_ptr.vmem [resolvable:$true] %s379
          %385 = dma.hbm_to_vmem [thread:$0]  %s4, 1024, %s380, [#allocation13], 64, 64, 4
        $region24: #{tpu_custom_call.1} parent=11 // pred_fallthru
          _
        // Predicated region
        $region25: #{tpu_custom_call.1} parent=11 // pred_check
          %p386 = pneg %p188
        $region26: #{tpu_custom_call.1} parent=11 // pred_check_branch
          %388 = sbr.rel (%p386) target = $region28
        $region27: #{tpu_custom_call.1} parent=11 // pred_region
          _
        $region28: #{tpu_custom_call.1} parent=11 // pred_fallthru
          _
        // Predicated region
        $region29: #{tpu_custom_call.1} parent=11 // pred_check
          %p389 = pneg %p209
        $region30: #{tpu_custom_call.1} parent=11 // pred_check_branch
          %391 = sbr.rel (%p389) target = $region32
        $region31: #{tpu_custom_call.1} parent=11 // pred_region
          %s393 = ssub.s32 1024, 1024
          %394 = vsyncadd [#allocation13], %s393
          %s395 = sshll.u32 [#allocation14], 4
          %s396 = int_to_ptr.vmem [resolvable:$true] %s395
          %401 = dma.hbm_to_vmem [thread:$0]  %s6, 1024, %s396, [#allocation13], 64, 64, 4
        $region32: #{tpu_custom_call.1} parent=11 // pred_fallthru
          _
        // Predicated region
        $region33: #{tpu_custom_call.1} parent=11 // pred_check
          %p402 = pneg %p230
        $region34: #{tpu_custom_call.1} parent=11 // pred_check_branch
          %404 = sbr.rel (%p402) target = $region36
        $region35: #{tpu_custom_call.1} parent=11 // pred_region
          _
        $region36: #{tpu_custom_call.1} parent=11 // pred_fallthru
          _
        // Predicated region
        $region37: #{tpu_custom_call.1} parent=11 // pred_check
          %p405 = pneg %p251
        $region38: #{tpu_custom_call.1} parent=11 // pred_check_branch
          %407 = sbr.rel (%p405) target = $region40
        $region39: #{tpu_custom_call.1} parent=11 // pred_region
          %s409 = ssub.s32 1024, 1024
          %410 = vsyncadd [#allocation16], %s409
          %s411 = sshll.u32 [#allocation15], 4
          %s412 = int_to_ptr.vmem [resolvable:$true] %s411
          %417 = dma.hbm_to_vmem [thread:$0]  %s8, 1024, %s412, [#allocation16], 64, 64, 4
        $region40: #{tpu_custom_call.1} parent=11 // pred_fallthru
          _
        // Predicated region
        $region41: #{tpu_custom_call.1} parent=11 // pred_check
          %p418 = pneg %p272
        $region42: #{tpu_custom_call.1} parent=11 // pred_check_branch
          %420 = sbr.rel (%p418) target = $region44
        $region43: #{tpu_custom_call.1} parent=11 // pred_region
          _
        $region44: #{tpu_custom_call.1} parent=11 // pred_fallthru
          _
        // Predicated region
        $region45: #{tpu_custom_call.1} parent=11 // pred_check
          %p421 = pneg %p293
        $region46: #{tpu_custom_call.1} parent=11 // pred_check_branch
          %423 = sbr.rel (%p421) target = $region48
        $region47: #{tpu_custom_call.1} parent=11 // pred_region
          _
        $region48: #{tpu_custom_call.1} parent=11 // pred_fallthru
          _
        // Predicated region
        $region49: #{tpu_custom_call.1} parent=11 // pred_check
          %p424 = pneg %p314
        $region50: #{tpu_custom_call.1} parent=11 // pred_check_branch
          %426 = sbr.rel (%p424) target = $region52
        $region51: #{tpu_custom_call.1} parent=11 // pred_region
          _
        $region52: #{tpu_custom_call.1} parent=11 // pred_fallthru
          _
      $region12: #{tpu_custom_call.1} parent=5 // pred_fallthru
        _
      %p427 = scmp.lt.s32.totalorder %s29, 8
      // Predicated region
      $region53: #{tpu_custom_call.1} parent=5 // pred_check
        %p428 = pneg %p427
      $region54: #{tpu_custom_call.1} parent=5 // pred_check_branch
        %430 = sbr.rel (%p428) target = $region56
      $region55: #{tpu_custom_call.1} parent=5 // pred_region
        // Predicated region
        $region57: #{tpu_custom_call.1} parent=55 // pred_check
          %p431 = pneg %p70
        $region58: #{tpu_custom_call.1} parent=55 // pred_check_branch
          %433 = sbr.rel (%p431) target = $region60
        $region59: #{tpu_custom_call.1} parent=55 // pred_region
          %s434 = sand.u32 %s60, 1
          %s435 = scalar_lea.sflag [#allocation7], %s434
          %s436 = sand.u32 %s60, 1
          %s437 = smul.addr %s436, 8
          %s438 = scalar_lea.vmem [#allocation6], %s437
          %s440 = ssub.s32 128, 128
          %441 = vsyncadd %s435, %s440
          %s442 = smul.addr %s36, 2
          %s443 = sadd.s32 %s37, %s442
          %s444 = smul.addr %s443, 128
          %s445 = scalar_lea.hbm %s0, %s444
          %s447 = sshll.u32 %s438, 4
          %s448 = int_to_ptr.vmem [resolvable:$true] %s447
          %450 = dma.hbm_to_vmem [thread:$0]  %s445, 128, %s448, %s435
        $region60: #{tpu_custom_call.1} parent=55 // pred_fallthru
          _
        // Predicated region
        $region61: #{tpu_custom_call.1} parent=55 // pred_check
          %p451 = pneg %p98
        $region62: #{tpu_custom_call.1} parent=55 // pred_check_branch
          %453 = sbr.rel (%p451) target = $region64
        $region63: #{tpu_custom_call.1} parent=55 // pred_region
          %s454 = sand.u32 %s29, 1
          %s455 = scalar_lea.sflag [#allocation10], %s454
          %s456 = sand.u32 %s88, 1
          %s457 = smul.addr %s456, 8
          %s458 = scalar_lea.vmem [#allocation9], %s457
          %s460 = ssub.s32 128, 128
          %461 = vsyncadd %s455, %s460
          %s462 = smul.addr %s36, 2
          %s463 = sadd.s32 %s38, %s462
          %s464 = smul.addr %s463, 128
          %s465 = scalar_lea.hbm %s1, %s464
          %s467 = sshll.u32 %s458, 4
          %s468 = int_to_ptr.vmem [resolvable:$true] %s467
          %470 = dma.hbm_to_vmem [thread:$0]  %s465, 128, %s468, %s455
        $region64: #{tpu_custom_call.1} parent=55 // pred_fallthru
          _
      $region56: #{tpu_custom_call.1} parent=5 // pred_fallthru
        _
      %p471 = scmp.le.s32.totalorder 1, %s29
      %p472 = scmp.lt.s32.totalorder %s29, 9
      %p473 = pnand %p471, %p472
      %p474 = pneg %p473
      // Predicated region
      $region65: #{tpu_custom_call.1} parent=5 // pred_check
        _
      $region66: #{tpu_custom_call.1} parent=5 // pred_check_branch
        %476 = sbr.rel (%p473) target = $region68
      $region67: #{tpu_custom_call.1} parent=5 // pred_region
        %s477 = ssub.s32 %s29, 1
        %s478 = sand.u32 %s63, 1
        %s479 = scalar_lea.sflag [#allocation7], %s478
        %s480 = sand.u32 %s63, 1
        %s481 = smul.addr %s480, 8
        %s482 = scalar_lea.vmem [#allocation6], %s481
        // Predicated region
        $region69: #{tpu_custom_call.1} parent=67 // pred_check
          %p483 = pneg %p76
        $region70: #{tpu_custom_call.1} parent=67 // pred_check_branch
          %485 = sbr.rel (%p483) target = $region72
        $region71: #{tpu_custom_call.1} parent=67 // pred_region
          %486 = dma.done %s479, 128
        $region72: #{tpu_custom_call.1} parent=67 // pred_fallthru
          _
        %s487 = sand.u32 %s34, 1
        %s488 = scalar_lea.sflag [#allocation10], %s487
        %s489 = sand.u32 %s91, 1
        %s490 = smul.addr %s489, 8
        %s491 = scalar_lea.vmem [#allocation9], %s490
        // Predicated region
        $region73: #{tpu_custom_call.1} parent=67 // pred_check
          %p492 = pneg %p104
        $region74: #{tpu_custom_call.1} parent=67 // pred_check_branch
          %494 = sbr.rel (%p492) target = $region76
        $region75: #{tpu_custom_call.1} parent=67 // pred_region
          %495 = dma.done %s488, 128
        $region76: #{tpu_custom_call.1} parent=67 // pred_fallthru
          _
        // Predicated region
        $region77: #{tpu_custom_call.1} parent=67 // pred_check
          %p496 = pneg %p125
        $region78: #{tpu_custom_call.1} parent=67 // pred_check_branch
          %498 = sbr.rel (%p496) target = $region80
        $region79: #{tpu_custom_call.1} parent=67 // pred_region
          %499 = dma.done [#allocation10], 1024
        $region80: #{tpu_custom_call.1} parent=67 // pred_fallthru
          _
        // Predicated region
        $region81: #{tpu_custom_call.1} parent=67 // pred_check
          %p500 = pneg %p167
        $region82: #{tpu_custom_call.1} parent=67 // pred_check_branch
          %502 = sbr.rel (%p500) target = $region84
        $region83: #{tpu_custom_call.1} parent=67 // pred_region
          %503 = dma.done [#allocation13], 1024
        $region84: #{tpu_custom_call.1} parent=67 // pred_fallthru
          _
        // Predicated region
        $region85: #{tpu_custom_call.1} parent=67 // pred_check
          %p504 = pneg %p209
        $region86: #{tpu_custom_call.1} parent=67 // pred_check_branch
          %506 = sbr.rel (%p504) target = $region88
        $region87: #{tpu_custom_call.1} parent=67 // pred_region
          %507 = dma.done [#allocation13], 1024
        $region88: #{tpu_custom_call.1} parent=67 // pred_fallthru
          _
        // Predicated region
        $region89: #{tpu_custom_call.1} parent=67 // pred_check
          %p508 = pneg %p251
        $region90: #{tpu_custom_call.1} parent=67 // pred_check_branch
          %510 = sbr.rel (%p508) target = $region92
        $region91: #{tpu_custom_call.1} parent=67 // pred_region
          %511 = dma.done [#allocation16], 1024
        $region92: #{tpu_custom_call.1} parent=67 // pred_fallthru
          _
        %s512 = sand.u32 %s63, 1
        %s513 = scalar_lea.sflag [#allocation7], %s512
        %s514 = sand.u32 %s63, 1
        %s515 = smul.addr %s514, 8
        %s516 = scalar_lea.vmem [#allocation6], %s515
        %p517 = pneg %p76
        %p518 = pneg %p73
        %s519 = sand.u32 %s34, 1
        %s520 = scalar_lea.sflag [#allocation10], %s519
        %s521 = sand.u32 %s91, 1
        %s522 = smul.addr %s521, 8
        %s523 = scalar_lea.vmem [#allocation9], %s522
        %p524 = pneg %p104
        %p525 = pneg %p101
        %p526 = pneg %p125
        %p527 = pneg %p122
        %p528 = pneg %p146
        %p529 = pneg %p143
        %p530 = pneg %p167
        %p531 = pneg %p164
        %p532 = pneg %p188
        %p533 = pneg %p185
        %p534 = pneg %p209
        %p535 = pneg %p206
        %p536 = pneg %p230
        %p537 = pneg %p227
        %p538 = pneg %p251
        %p539 = pneg %p248
        %p540 = pneg %p272
        %p541 = pneg %p269
        %p542 = pneg %p293
        %p543 = pneg %p290
        %p544 = pneg %p314
        %p545 = pneg %p311
        %p546 = pneg %p342
        %p547 = pneg %p339
        %s548 = sand.u32 %s329, 1
        %s549 = scalar_lea.sflag [#allocation8], %s548
        %s550 = sand.u32 %s329, 1
        %s551 = smul.addr %s550, 8
        %s552 = scalar_lea.vmem [#allocation17], %s551
        %p554 = scmp.eq.s32.totalorder %s41, 0
        // Predicated region
        $region93: #{tpu_custom_call.1} parent=67 // pred_check
          %p555 = pneg %p554
        $region94: #{tpu_custom_call.1} parent=67 // pred_check_branch
          %557 = sbr.rel (%p555) target = $region96
        $region95: #{tpu_custom_call.1} parent=67 // pred_region
          %v558 = vld [vmem:[%s482] sm:$0xff]
          %v559 = vpack.c.bf16 %v558, %v558
          %v560 = vld [vmem:[#allocation11] sm:$0xf]
          %v561 = vld [vmem:[#allocation11 + $0x4] sm:$0xf]
          %v562 = vld [vmem:[#allocation11 + $0x8] sm:$0xf]
          %v563 = vld [vmem:[#allocation11 + $0xc] sm:$0xf]
          %v564 = vld [vmem:[#allocation11 + $0x10] sm:$0xf]
          %v565 = vld [vmem:[#allocation11 + $0x14] sm:$0xf]
          %v566 = vld [vmem:[#allocation11 + $0x18] sm:$0xf]
          %v567 = vld [vmem:[#allocation11 + $0x1c] sm:$0xf]
          %v568 = vld [vmem:[#allocation11 + $0x20] sm:$0xf]
          %v569 = vld [vmem:[#allocation11 + $0x24] sm:$0xf]
          %v570 = vld [vmem:[#allocation11 + $0x28] sm:$0xf]
          %v571 = vld [vmem:[#allocation11 + $0x2c] sm:$0xf]
          %v572 = vld [vmem:[#allocation11 + $0x30] sm:$0xf]
          %v573 = vld [vmem:[#allocation11 + $0x34] sm:$0xf]
          %v574 = vld [vmem:[#allocation11 + $0x38] sm:$0xf]
          %v575 = vld [vmem:[#allocation11 + $0x3c] sm:$0xf]
          %v576 = vld [vmem:[%s3] sm:$0x1]
          %v578 = vlaneseq
          %v579 = vshrl.u32 %v578, 7
          %v580 = vsub.s32 0, %v579
          %v581 = vrot.slane %v576, %v580
          %v599 = vunpack.c.l.b16 %v560
          %v600 = vunpack.c.l.b16 %v561
          %v601 = vunpack.c.l.b16 %v562
          %v602 = vunpack.c.l.b16 %v563
          %v603 = vunpack.c.l.b16 %v564
          %v604 = vunpack.c.l.b16 %v565
          %v605 = vunpack.c.l.b16 %v566
          %v606 = vunpack.c.l.b16 %v567
          %v607 = vunpack.c.l.b16 %v568
          %v608 = vunpack.c.l.b16 %v569
          %v609 = vunpack.c.l.b16 %v570
          %v610 = vunpack.c.l.b16 %v571
          %v611 = vunpack.c.l.b16 %v572
          %v612 = vunpack.c.l.b16 %v573
          %v613 = vunpack.c.l.b16 %v574
          %v614 = vunpack.c.l.b16 %v575
          %v615 = vpack.c.b16 %v600, %v599
          %v616 = vpack.c.b16 %v602, %v601
          %v617 = vpack.c.b16 %v604, %v603
          %v618 = vpack.c.b16 %v606, %v605
          %v619 = vpack.c.b16 %v608, %v607
          %v620 = vpack.c.b16 %v610, %v609
          %v621 = vpack.c.b16 %v612, %v611
          %v622 = vpack.c.b16 %v614, %v613
          %631 = vmatprep.subr.bf16.mxu0 0
          %632 = vmatpush1.bf16.msra.mxu0 %v615
          %633 = vmatprep.subr.bf16.mxu0 0
          %634 = vmatpush1.bf16.msra.mxu0 %v616
          %635 = vmatprep.subr.bf16.mxu0 0
          %636 = vmatpush1.bf16.msra.mxu0 %v617
          %637 = vmatprep.subr.bf16.mxu0 0
          %638 = vmatpush1.bf16.msra.mxu0 %v618
          %639 = vmatprep.subr.bf16.mxu0 0
          %640 = vmatpush1.bf16.msra.mxu0 %v619
          %641 = vmatprep.subr.bf16.mxu0 0
          %642 = vmatpush1.bf16.msra.mxu0 %v620
          %643 = vmatprep.subr.bf16.mxu0 0
          %644 = vmatpush1.bf16.msra.mxu0 %v621
          %645 = vmatprep.subr.bf16.mxu0 0
          %646 = vmatpush1.bf16.msra.mxu0 %v622
          %647 = vmatprep.subr.bf16.mxu0 0
          %648 = vmatpush1.bf16.msra.mxu0 0
          %649 = vmatprep.subr.bf16.mxu0 0
          %650 = vmatpush1.bf16.msra.mxu0 0
          %651 = vmatprep.subr.bf16.mxu0 0
          %652 = vmatpush1.bf16.msra.mxu0 0
          %653 = vmatprep.subr.bf16.mxu0 0
          %654 = vmatpush1.bf16.msra.mxu0 0
          %655 = vmatprep.subr.bf16.mxu0 0
          %656 = vmatpush1.bf16.msra.mxu0 0
          %657 = vmatprep.subr.bf16.mxu0 0
          %658 = vmatpush1.bf16.msra.mxu0 0
          %659 = vmatprep.subr.bf16.mxu0 0
          %660 = vmatpush1.bf16.msra.mxu0 0
          %661 = vmatprep.subr.bf16.mxu0 0
          %662 = vmatpush1.bf16.msra.mxu0 0
          %663 = vmatprep.mubr.bf16.mxu0 0
          %664 = vmatmul.mubr.bf16.gmra.mrb[0].mxu0 %v559
          %v665 = vpop.f32.mrb[0].mxu0
          %v666 = vadd.f32 %v581, %v665
          %v667 = vpop.f32.mrb[0].mxu0
          %v668 = vpop.f32.mrb[0].mxu0
          %v669 = vpop.f32.mrb[0].mxu0
          %670 = vdwg.mxu0
          %v671 = vpack.c.bf16 %v666, %v666
          %672 = vst [vmem:[#allocation2] sm:$0xf] %v671
          %vm673 = vcmask 31744
          %674 = vst.msk [vmem:[#allocation3] sm:$0xff] %vm673, -1e+30
          %675 = vst.msk [vmem:[#allocation4] sm:$0xff] %vm673, 0.0
          %676 = vst [vmem:[#allocation5] sm:$0xff] 0.0
        $region96: #{tpu_custom_call.1} parent=67 // pred_fallthru
          _
        %s677 = smul.u32 %s41, 8
        %s678 = smul.u32 %s40, 8
        %s679 = sadd.s32 %s678, 7
        %p680 = scmp.le.s32.totalorder %s677, %s679
        // Predicated region
        $region97: #{tpu_custom_call.1} parent=67 // pred_check
          %p681 = pneg %p680
        $region98: #{tpu_custom_call.1} parent=67 // pred_check_branch
          %683 = sbr.rel (%p681) target = $region100
        $region99: #{tpu_custom_call.1} parent=67 // pred_region
          %v684 = vld [vmem:[%s491] sm:$0xff]
          %v685 = vpack.c.bf16 %v684, %v684
          %v686 = vld [vmem:[#allocation12] sm:$0xf]
          %v687 = vld [vmem:[#allocation12 + $0x4] sm:$0xf]
          %v688 = vld [vmem:[#allocation12 + $0x8] sm:$0xf]
          %v689 = vld [vmem:[#allocation12 + $0xc] sm:$0xf]
          %v690 = vld [vmem:[#allocation12 + $0x10] sm:$0xf]
          %v691 = vld [vmem:[#allocation12 + $0x14] sm:$0xf]
          %v692 = vld [vmem:[#allocation12 + $0x18] sm:$0xf]
          %v693 = vld [vmem:[#allocation12 + $0x1c] sm:$0xf]
          %v694 = vld [vmem:[#allocation12 + $0x20] sm:$0xf]
          %v695 = vld [vmem:[#allocation12 + $0x24] sm:$0xf]
          %v696 = vld [vmem:[#allocation12 + $0x28] sm:$0xf]
          %v697 = vld [vmem:[#allocation12 + $0x2c] sm:$0xf]
          %v698 = vld [vmem:[#allocation12 + $0x30] sm:$0xf]
          %v699 = vld [vmem:[#allocation12 + $0x34] sm:$0xf]
          %v700 = vld [vmem:[#allocation12 + $0x38] sm:$0xf]
          %v701 = vld [vmem:[#allocation12 + $0x3c] sm:$0xf]
          %v702 = vld [vmem:[%s5] sm:$0x1]
          %v704 = vlaneseq
          %v705 = vshrl.u32 %v704, 7
          %v706 = vsub.s32 0, %v705
          %v707 = vrot.slane %v702, %v706
          %v725 = vunpack.c.l.b16 %v686
          %v726 = vunpack.c.l.b16 %v687
          %v727 = vunpack.c.l.b16 %v688
          %v728 = vunpack.c.l.b16 %v689
          %v729 = vunpack.c.l.b16 %v690
          %v730 = vunpack.c.l.b16 %v691
          %v731 = vunpack.c.l.b16 %v692
          %v732 = vunpack.c.l.b16 %v693
          %v733 = vunpack.c.l.b16 %v694
          %v734 = vunpack.c.l.b16 %v695
          %v735 = vunpack.c.l.b16 %v696
          %v736 = vunpack.c.l.b16 %v697
          %v737 = vunpack.c.l.b16 %v698
          %v738 = vunpack.c.l.b16 %v699
          %v739 = vunpack.c.l.b16 %v700
          %v740 = vunpack.c.l.b16 %v701
          %v741 = vpack.c.b16 %v726, %v725
          %v742 = vpack.c.b16 %v728, %v727
          %v743 = vpack.c.b16 %v730, %v729
          %v744 = vpack.c.b16 %v732, %v731
          %v745 = vpack.c.b16 %v734, %v733
          %v746 = vpack.c.b16 %v736, %v735
          %v747 = vpack.c.b16 %v738, %v737
          %v748 = vpack.c.b16 %v740, %v739
          %757 = vmatprep.subr.bf16.mxu0 0
          %758 = vmatpush1.bf16.msra.mxu0 %v741
          %759 = vmatprep.subr.bf16.mxu0 0
          %760 = vmatpush1.bf16.msra.mxu0 %v742
          %761 = vmatprep.subr.bf16.mxu0 0
          %762 = vmatpush1.bf16.msra.mxu0 %v743
          %763 = vmatprep.subr.bf16.mxu0 0
          %764 = vmatpush1.bf16.msra.mxu0 %v744
          %765 = vmatprep.subr.bf16.mxu0 0
          %766 = vmatpush1.bf16.msra.mxu0 %v745
          %767 = vmatprep.subr.bf16.mxu0 0
          %768 = vmatpush1.bf16.msra.mxu0 %v746
          %769 = vmatprep.subr.bf16.mxu0 0
          %770 = vmatpush1.bf16.msra.mxu0 %v747
          %771 = vmatprep.subr.bf16.mxu0 0
          %772 = vmatpush1.bf16.msra.mxu0 %v748
          %773 = vmatprep.subr.bf16.mxu0 0
          %774 = vmatpush1.bf16.msra.mxu0 0
          %775 = vmatprep.subr.bf16.mxu0 0
          %776 = vmatpush1.bf16.msra.mxu0 0
          %777 = vmatprep.subr.bf16.mxu0 0
          %778 = vmatpush1.bf16.msra.mxu0 0
          %779 = vmatprep.subr.bf16.mxu0 0
          %780 = vmatpush1.bf16.msra.mxu0 0
          %781 = vmatprep.subr.bf16.mxu0 0
          %782 = vmatpush1.bf16.msra.mxu0 0
          %783 = vmatprep.subr.bf16.mxu0 0
          %784 = vmatpush1.bf16.msra.mxu0 0
          %785 = vmatprep.subr.bf16.mxu0 0
          %786 = vmatpush1.bf16.msra.mxu0 0
          %787 = vmatprep.subr.bf16.mxu0 0
          %788 = vmatpush1.bf16.msra.mxu0 0
          %789 = vmatprep.mubr.bf16.mxu0 0
          %790 = vmatmul.mubr.bf16.gmra.mrb[0].mxu0 %v685
          %v791 = vpop.f32.mrb[0].mxu0
          %v792 = vadd.f32 %v707, %v791
          %v793 = vpop.f32.mrb[0].mxu0
          %v794 = vpop.f32.mrb[0].mxu0
          %v795 = vpop.f32.mrb[0].mxu0
          %796 = vdwg.mxu0
          %v797 = vld [vmem:[#allocation14] sm:$0xf]
          %v798 = vld [vmem:[#allocation14 + $0x4] sm:$0xf]
          %v799 = vld [vmem:[#allocation14 + $0x8] sm:$0xf]
          %v800 = vld [vmem:[#allocation14 + $0xc] sm:$0xf]
          %v801 = vld [vmem:[#allocation14 + $0x10] sm:$0xf]
          %v802 = vld [vmem:[#allocation14 + $0x14] sm:$0xf]
          %v803 = vld [vmem:[#allocation14 + $0x18] sm:$0xf]
          %v804 = vld [vmem:[#allocation14 + $0x1c] sm:$0xf]
          %v805 = vld [vmem:[#allocation14 + $0x20] sm:$0xf]
          %v806 = vld [vmem:[#allocation14 + $0x24] sm:$0xf]
          %v807 = vld [vmem:[#allocation14 + $0x28] sm:$0xf]
          %v808 = vld [vmem:[#allocation14 + $0x2c] sm:$0xf]
          %v809 = vld [vmem:[#allocation14 + $0x30] sm:$0xf]
          %v810 = vld [vmem:[#allocation14 + $0x34] sm:$0xf]
          %v811 = vld [vmem:[#allocation14 + $0x38] sm:$0xf]
          %v812 = vld [vmem:[#allocation14 + $0x3c] sm:$0xf]
          %v813 = vld [vmem:[%s7] sm:$0x1]
          %v815 = vlaneseq
          %v816 = vshrl.u32 %v815, 7
          %v817 = vsub.s32 0, %v816
          %v818 = vrot.slane %v813, %v817
          %v836 = vunpack.c.l.b16 %v797
          %v837 = vunpack.c.l.b16 %v798
          %v838 = vunpack.c.l.b16 %v799
          %v839 = vunpack.c.l.b16 %v800
          %v840 = vunpack.c.l.b16 %v801
          %v841 = vunpack.c.l.b16 %v802
          %v842 = vunpack.c.l.b16 %v803
          %v843 = vunpack.c.l.b16 %v804
          %v844 = vunpack.c.l.b16 %v805
          %v845 = vunpack.c.l.b16 %v806
          %v846 = vunpack.c.l.b16 %v807
          %v847 = vunpack.c.l.b16 %v808
          %v848 = vunpack.c.l.b16 %v809
          %v849 = vunpack.c.l.b16 %v810
          %v850 = vunpack.c.l.b16 %v811
          %v851 = vunpack.c.l.b16 %v812
          %v852 = vpack.c.b16 %v837, %v836
          %v853 = vpack.c.b16 %v839, %v838
          %v854 = vpack.c.b16 %v841, %v840
          %v855 = vpack.c.b16 %v843, %v842
          %v856 = vpack.c.b16 %v845, %v844
          %v857 = vpack.c.b16 %v847, %v846
          %v858 = vpack.c.b16 %v849, %v848
          %v859 = vpack.c.b16 %v851, %v850
          %868 = vmatprep.subr.bf16.mxu0 0
          %869 = vmatpush1.bf16.msra.mxu0 %v852
          %870 = vmatprep.subr.bf16.mxu0 0
          %871 = vmatpush1.bf16.msra.mxu0 %v853
          %872 = vmatprep.subr.bf16.mxu0 0
          %873 = vmatpush1.bf16.msra.mxu0 %v854
          %874 = vmatprep.subr.bf16.mxu0 0
          %875 = vmatpush1.bf16.msra.mxu0 %v855
          %876 = vmatprep.subr.bf16.mxu0 0
          %877 = vmatpush1.bf16.msra.mxu0 %v856
          %878 = vmatprep.subr.bf16.mxu0 0
          %879 = vmatpush1.bf16.msra.mxu0 %v857
          %880 = vmatprep.subr.bf16.mxu0 0
          %881 = vmatpush1.bf16.msra.mxu0 %v858
          %882 = vmatprep.subr.bf16.mxu0 0
          %883 = vmatpush1.bf16.msra.mxu0 %v859
          %884 = vmatprep.subr.bf16.mxu0 0
          %885 = vmatpush1.bf16.msra.mxu0 0
          %886 = vmatprep.subr.bf16.mxu0 0
          %887 = vmatpush1.bf16.msra.mxu0 0
          %888 = vmatprep.subr.bf16.mxu0 0
          %889 = vmatpush1.bf16.msra.mxu0 0
          %890 = vmatprep.subr.bf16.mxu0 0
          %891 = vmatpush1.bf16.msra.mxu0 0
          %892 = vmatprep.subr.bf16.mxu0 0
          %893 = vmatpush1.bf16.msra.mxu0 0
          %894 = vmatprep.subr.bf16.mxu0 0
          %895 = vmatpush1.bf16.msra.mxu0 0
          %896 = vmatprep.subr.bf16.mxu0 0
          %897 = vmatpush1.bf16.msra.mxu0 0
          %898 = vmatprep.subr.bf16.mxu0 0
          %899 = vmatpush1.bf16.msra.mxu0 0
          %900 = vmatprep.mubr.bf16.mxu0 0
          %901 = vmatmul.mubr.bf16.gmra.mrb[0].mxu0 %v685
          %v902 = vpop.f32.mrb[0].mxu0
          %v903 = vadd.f32 %v818, %v902
          %v904 = vpop.f32.mrb[0].mxu0
          %v905 = vpop.f32.mrb[0].mxu0
          %v906 = vpop.f32.mrb[0].mxu0
          %907 = vdwg.mxu0
          %v908 = vlaneseq
          %v909 = vshrl.u32 %v908, 7
          %v910 = vstv %s678
          %v911 = vadd.s32 %v910, %v909
          %v912 = vlaneseq
          %v913 = vand.u32 %v912, 127
          %v914 = vstv %s677
          %v915 = vadd.s32 %v914, %v913
          %vm916 = vcmp.gt.s32.totalorder %v915, %v911
          %v917 = vpack.c.bf16 %v792, %v792
          %v918 = vpack.c.bf16 %v903, %v903
          %v919 = vld [vmem:[#allocation2] sm:$0xf]
          %vm920 = vcmask 261120
          %v922 = vsel %vm920, %v919, 0
          %v925 = vsel %vm920, %v917, 0
          %927 = vmatprep.subr.bf16.mxu0 0
          %928 = vmatpush1.bf16.xpose.msra.mxu0 %v925
          %929 = vmatprep.subr.bf16.mxu0 0
          %930 = vmatpush1.bf16.xpose.msra.mxu0 0
          %931 = vmatprep.subr.bf16.mxu0 0
          %932 = vmatpush1.bf16.xpose.msra.mxu0 0
          %933 = vmatprep.subr.bf16.mxu0 0
          %934 = vmatpush1.bf16.xpose.msra.mxu0 0
          %935 = vmatprep.subr.bf16.mxu0 0
          %936 = vmatpush1.bf16.xpose.msra.mxu0 0
          %937 = vmatprep.subr.bf16.mxu0 0
          %938 = vmatpush1.bf16.xpose.msra.mxu0 0
          %939 = vmatprep.subr.bf16.mxu0 0
          %940 = vmatpush1.bf16.xpose.msra.mxu0 0
          %941 = vmatprep.subr.bf16.mxu0 0
          %942 = vmatpush1.bf16.xpose.msra.mxu0 0
          %943 = vmatprep.subr.bf16.mxu0 0
          %944 = vmatpush1.bf16.xpose.msra.mxu0 0
          %945 = vmatprep.subr.bf16.mxu0 0
          %946 = vmatpush1.bf16.xpose.msra.mxu0 0
          %947 = vmatprep.subr.bf16.mxu0 0
          %948 = vmatpush1.bf16.xpose.msra.mxu0 0
          %949 = vmatprep.subr.bf16.mxu0 0
          %950 = vmatpush1.bf16.xpose.msra.mxu0 0
          %951 = vmatprep.subr.bf16.mxu0 0
          %952 = vmatpush1.bf16.xpose.msra.mxu0 0
          %953 = vmatprep.subr.bf16.mxu0 0
          %954 = vmatpush1.bf16.xpose.msra.mxu0 0
          %955 = vmatprep.subr.bf16.mxu0 0
          %956 = vmatpush1.bf16.xpose.msra.mxu0 0
          %957 = vmatprep.subr.bf16.mxu0 0
          %958 = vmatpush1.bf16.xpose.msra.mxu0 0
          %959 = vmatprep.mubr.bf16.mxu0 0
          %960 = vmatmul.mubr.bf16.gmra.mrb[0].mxu0 %v922
          %v961 = vpop.f32.mrb[0].mxu0
          %v962 = vadd.f32 0.0, %v961
          %v963 = vpop.f32.mrb[0].mxu0
          %v964 = vpop.f32.mrb[0].mxu0
          %v965 = vpop.f32.mrb[0].mxu0
          %966 = vdwg.mxu0
          %v967 = vmul.f32 %v962, 0.088388346
          %v968 = vsel %vm916, -1e+09, %v967
          %v969 = vld [vmem:[#allocation3] sm:$0xff]
          %vm970 = vcmask 64512
          %v971 = vsel %vm970, %v968, -inf
          %972 = vmax.xlane.f32.xlu0 %v971
          %v973 = vpop.xlane.xlu0 %972
          %v974 = vmax.f32 %v969, %v973
          %v975 = vsub.f32 %v969, %v974
          %v976 = vmul.f32 %v975, 1.442695
          %v977 = vpow.pop %v976
          %979 = vset.pattern.permute.xlu0 0
          %980 = vperm.xlu0 %979, %v974
          %v981 = vpop.permute.xlu0 %980
          %v983 = vsub.f32 %v968, %v981
          %v984 = vmul.f32 %v983, 1.442695
          %v985 = vpow.pop %v984
          %v986 = vld [vmem:[#allocation4] sm:$0xff]
          %v987 = vmul.f32 %v977, %v986
          %v988 = vsel %vm970, %v985, 0.0
          %989 = vadd.xlane.f32.xlu0 %v988
          %v990 = vpop.xlane.xlu0 %989
          %v991 = vadd.f32 %v987, %v990
          %vm992 = vcmask 7168
          %993 = vst.msk [vmem:[#allocation4] sm:$0xff] %vm992, %v991
          %v994 = vld [vmem:[#allocation5] sm:$0xff]
          %996 = vset.pattern.permute.xlu0 0
          %997 = vperm.xlu0 %996, %v977
          %v998 = vpop.permute.xlu0 %997
          %v1000 = vmul.f32 %v998, %v994
          %v1001 = vpack.c.bf16 %v985, %v985
          %v1003 = vsel %vm970, %v1001, 0
          %vm1005 = vcmask 1043456
          %v1007 = vsel %vm1005, %v918, 0
          %1009 = vmatprep.subr.bf16.mxu0 0
          %1010 = vmatpush1.bf16.msra.mxu0 %v1007
          %1011 = vmatprep.subr.bf16.mxu0 0
          %1012 = vmatpush1.bf16.msra.mxu0 0
          %1013 = vmatprep.subr.bf16.mxu0 0
          %1014 = vmatpush1.bf16.msra.mxu0 0
          %1015 = vmatprep.subr.bf16.mxu0 0
          %1016 = vmatpush1.bf16.msra.mxu0 0
          %1017 = vmatprep.subr.bf16.mxu0 0
          %1018 = vmatpush1.bf16.msra.mxu0 0
          %1019 = vmatprep.subr.bf16.mxu0 0
          %1020 = vmatpush1.bf16.msra.mxu0 0
          %1021 = vmatprep.subr.bf16.mxu0 0
          %1022 = vmatpush1.bf16.msra.mxu0 0
          %1023 = vmatprep.subr.bf16.mxu0 0
          %1024 = vmatpush1.bf16.msra.mxu0 0
          %1025 = vmatprep.subr.bf16.mxu0 0
          %1026 = vmatpush1.bf16.msra.mxu0 0
          %1027 = vmatprep.subr.bf16.mxu0 0
          %1028 = vmatpush1.bf16.msra.mxu0 0
          %1029 = vmatprep.subr.bf16.mxu0 0
          %1030 = vmatpush1.bf16.msra.mxu0 0
          %1031 = vmatprep.subr.bf16.mxu0 0
          %1032 = vmatpush1.bf16.msra.mxu0 0
          %1033 = vmatprep.subr.bf16.mxu0 0
          %1034 = vmatpush1.bf16.msra.mxu0 0
          %1035 = vmatprep.subr.bf16.mxu0 0
          %1036 = vmatpush1.bf16.msra.mxu0 0
          %1037 = vmatprep.subr.bf16.mxu0 0
          %1038 = vmatpush1.bf16.msra.mxu0 0
          %1039 = vmatprep.subr.bf16.mxu0 0
          %1040 = vmatpush1.bf16.msra.mxu0 0
          %1041 = vmatprep.mubr.bf16.mxu0 0
          %1042 = vmatmul.mubr.bf16.gmra.mrb[0].mxu0 %v1003
          %v1043 = vpop.f32.mrb[0].mxu0
          %v1044 = vadd.f32 0.0, %v1043
          %v1045 = vpop.f32.mrb[0].mxu0
          %v1046 = vpop.f32.mrb[0].mxu0
          %v1047 = vpop.f32.mrb[0].mxu0
          %1048 = vdwg.mxu0
          %v1049 = vadd.f32 %v1000, %v1044
          %1050 = vst.msk [vmem:[#allocation5] sm:$0xff] %vm920, %v1049
          %1051 = vst.msk [vmem:[#allocation3] sm:$0xff] %vm992, %v974
          %v1052 = vld [vmem:[#allocation2] sm:$0xf]
          %v1054 = vunpack.c.l.b16 %v1052
          %v1055 = vpack.c.b16 %v1054, %v1054
          %1056 = vrot.lane.b32.xlu0 %v1055, 96
          %v1057 = vpop.permute.xlu0 %1056
          %1059 = vrot.lane.b32.xlu0 %v917, 96
          %v1060 = vpop.permute.xlu0 %1059
          %v1062 = vsel %vm920, %v1057, 0
          %v1065 = vsel %vm920, %v1060, 0
          %1067 = vmatprep.subr.bf16.mxu0 0
          %1068 = vmatpush1.bf16.xpose.msra.mxu0 %v1065
          %1069 = vmatprep.subr.bf16.mxu0 0
          %1070 = vmatpush1.bf16.xpose.msra.mxu0 0
          %1071 = vmatprep.subr.bf16.mxu0 0
          %1072 = vmatpush1.bf16.xpose.msra.mxu0 0
          %1073 = vmatprep.subr.bf16.mxu0 0
          %1074 = vmatpush1.bf16.xpose.msra.mxu0 0
          %1075 = vmatprep.subr.bf16.mxu0 0
          %1076 = vmatpush1.bf16.xpose.msra.mxu0 0
          %1077 = vmatprep.subr.bf16.mxu0 0
          %1078 = vmatpush1.bf16.xpose.msra.mxu0 0
          %1079 = vmatprep.subr.bf16.mxu0 0
          %1080 = vmatpush1.bf16.xpose.msra.mxu0 0
          %1081 = vmatprep.subr.bf16.mxu0 0
          %1082 = vmatpush1.bf16.xpose.msra.mxu0 0
          %1083 = vmatprep.subr.bf16.mxu0 0
          %1084 = vmatpush1.bf16.xpose.msra.mxu0 0
          %1085 = vmatprep.subr.bf16.mxu0 0
          %1086 = vmatpush1.bf16.xpose.msra.mxu0 0
          %1087 = vmatprep.subr.bf16.mxu0 0
          %1088 = vmatpush1.bf16.xpose.msra.mxu0 0
          %1089 = vmatprep.subr.bf16.mxu0 0
          %1090 = vmatpush1.bf16.xpose.msra.mxu0 0
          %1091 = vmatprep.subr.bf16.mxu0 0
          %1092 = vmatpush1.bf16.xpose.msra.mxu0 0
          %1093 = vmatprep.subr.bf16.mxu0 0
          %1094 = vmatpush1.bf16.xpose.msra.mxu0 0
          %1095 = vmatprep.subr.bf16.mxu0 0
          %1096 = vmatpush1.bf16.xpose.msra.mxu0 0
          %1097 = vmatprep.subr.bf16.mxu0 0
          %1098 = vmatpush1.bf16.xpose.msra.mxu0 0
          %1099 = vmatprep.mubr.bf16.mxu0 0
          %1100 = vmatmul.mubr.bf16.gmra.mrb[0].mxu0 %v1062
          %v1101 = vpop.f32.mrb[0].mxu0
          %v1102 = vadd.f32 0.0, %v1101
          %v1103 = vpop.f32.mrb[0].mxu0
          %v1104 = vpop.f32.mrb[0].mxu0
          %v1105 = vpop.f32.mrb[0].mxu0
          %1106 = vdwg.mxu0
          %v1107 = vmul.f32 %v1102, 0.088388346
          %v1108 = vsel %vm916, -1e+09, %v1107
          %v1109 = vld [vmem:[#allocation3] sm:$0xff]
          %v1110 = vsel %vm970, %v1108, -inf
          %1111 = vmax.xlane.f32.xlu0 %v1110
          %v1112 = vpop.xlane.xlu0 %1111
          %v1113 = vmax.f32 %v1109, %v1112
          %v1114 = vsub.f32 %v1109, %v1113
          %v1115 = vmul.f32 %v1114, 1.442695
          %v1116 = vpow.pop %v1115
          %1118 = vset.pattern.permute.xlu0 1
          %1119 = vperm.xlu0 %1118, %v1113
          %v1120 = vpop.permute.xlu0 %1119
          %v1122 = vsub.f32 %v1108, %v1120
          %v1123 = vmul.f32 %v1122, 1.442695
          %v1124 = vpow.pop %v1123
          %v1125 = vld [vmem:[#allocation4] sm:$0xff]
          %v1126 = vmul.f32 %v1116, %v1125
          %v1127 = vsel %vm970, %v1124, 0.0
          %1128 = vadd.xlane.f32.xlu0 %v1127
          %v1129 = vpop.xlane.xlu0 %1128
          %v1130 = vadd.f32 %v1126, %v1129
          %vm1131 = vcmask 15368
          %1132 = vst.msk [vmem:[#allocation4] sm:$0xff] %vm1131, %v1130
          %v1133 = vld [vmem:[#allocation5] sm:$0xff]
          %1135 = vset.pattern.permute.xlu0 1
          %1136 = vperm.xlu0 %1135, %v1116
          %v1137 = vpop.permute.xlu0 %1136
          %v1139 = vmul.f32 %v1137, %v1133
          %v1140 = vpack.c.bf16 %v1124, %v1124
          %1142 = vrot.lane.b32.xlu0 %v918, 96
          %v1143 = vpop.permute.xlu0 %1142
          %v1145 = vsel %vm970, %v1140, 0
          %v1148 = vsel %vm1005, %v1143, 0
          %1150 = vmatprep.subr.bf16.mxu0 0
          %1151 = vmatpush1.bf16.msra.mxu0 %v1148
          %1152 = vmatprep.subr.bf16.mxu0 0
          %1153 = vmatpush1.bf16.msra.mxu0 0
          %1154 = vmatprep.subr.bf16.mxu0 0
          %1155 = vmatpush1.bf16.msra.mxu0 0
          %1156 = vmatprep.subr.bf16.mxu0 0
          %1157 = vmatpush1.bf16.msra.mxu0 0
          %1158 = vmatprep.subr.bf16.mxu0 0
          %1159 = vmatpush1.bf16.msra.mxu0 0
          %1160 = vmatprep.subr.bf16.mxu0 0
          %1161 = vmatpush1.bf16.msra.mxu0 0
          %1162 = vmatprep.subr.bf16.mxu0 0
          %1163 = vmatpush1.bf16.msra.mxu0 0
          %1164 = vmatprep.subr.bf16.mxu0 0
          %1165 = vmatpush1.bf16.msra.mxu0 0
          %1166 = vmatprep.subr.bf16.mxu0 0
          %1167 = vmatpush1.bf16.msra.mxu0 0
          %1168 = vmatprep.subr.bf16.mxu0 0
          %1169 = vmatpush1.bf16.msra.mxu0 0
          %1170 = vmatprep.subr.bf16.mxu0 0
          %1171 = vmatpush1.bf16.msra.mxu0 0
          %1172 = vmatprep.subr.bf16.mxu0 0
          %1173 = vmatpush1.bf16.msra.mxu0 0
          %1174 = vmatprep.subr.bf16.mxu0 0
          %1175 = vmatpush1.bf16.msra.mxu0 0
          %1176 = vmatprep.subr.bf16.mxu0 0
          %1177 = vmatpush1.bf16.msra.mxu0 0
          %1178 = vmatprep.subr.bf16.mxu0 0
          %1179 = vmatpush1.bf16.msra.mxu0 0
          %1180 = vmatprep.subr.bf16.mxu0 0
          %1181 = vmatpush1.bf16.msra.mxu0 0
          %1182 = vmatprep.mubr.bf16.mxu0 0
          %1183 = vmatmul.mubr.bf16.gmra.mrb[0].mxu0 %v1145
          %v1184 = vpop.f32.mrb[0].mxu0
          %v1185 = vadd.f32 0.0, %v1184
          %v1186 = vpop.f32.mrb[0].mxu0
          %v1187 = vpop.f32.mrb[0].mxu0
          %v1188 = vpop.f32.mrb[0].mxu0
          %1189 = vdwg.mxu0
          %1191 = vrot.lane.b32.xlu0 %v1185, 32
          %v1192 = vpop.permute.xlu0 %1191
          %v1194 = vadd.f32 %v1139, %v1192
          %vm1195 = vcmask 523520
          %1196 = vst.msk [vmem:[#allocation5] sm:$0xff] %vm1195, %v1194
          %1197 = vst.msk [vmem:[#allocation3] sm:$0xff] %vm1131, %v1113
          %v1198 = vld [vmem:[#allocation2] sm:$0xf]
          %v1200 = vunpack.c.l.b16 %v1198
          %v1201 = vpack.c.b16 %v1200, %v1200
          %1202 = vrot.lane.b32.xlu0 %v1201, 64
          %v1203 = vpop.permute.xlu0 %1202
          %1204 = vrot.lane.b32.xlu0 %v917, 64
          %v1205 = vpop.permute.xlu0 %1204
          %v1207 = vsel %vm920, %v1203, 0
          %v1210 = vsel %vm920, %v1205, 0
          %1212 = vmatprep.subr.bf16.mxu0 0
          %1213 = vmatpush1.bf16.xpose.msra.mxu0 %v1210
          %1214 = vmatprep.subr.bf16.mxu0 0
          %1215 = vmatpush1.bf16.xpose.msra.mxu0 0
          %1216 = vmatprep.subr.bf16.mxu0 0
          %1217 = vmatpush1.bf16.xpose.msra.mxu0 0
          %1218 = vmatprep.subr.bf16.mxu0 0
          %1219 = vmatpush1.bf16.xpose.msra.mxu0 0
          %1220 = vmatprep.subr.bf16.mxu0 0
          %1221 = vmatpush1.bf16.xpose.msra.mxu0 0
          %1222 = vmatprep.subr.bf16.mxu0 0
          %1223 = vmatpush1.bf16.xpose.msra.mxu0 0
          %1224 = vmatprep.subr.bf16.mxu0 0
          %1225 = vmatpush1.bf16.xpose.msra.mxu0 0
          %1226 = vmatprep.subr.bf16.mxu0 0
          %1227 = vmatpush1.bf16.xpose.msra.mxu0 0
          %1228 = vmatprep.subr.bf16.mxu0 0
          %1229 = vmatpush1.bf16.xpose.msra.mxu0 0
          %1230 = vmatprep.subr.bf16.mxu0 0
          %1231 = vmatpush1.bf16.xpose.msra.mxu0 0
          %1232 = vmatprep.subr.bf16.mxu0 0
          %1233 = vmatpush1.bf16.xpose.msra.mxu0 0
          %1234 = vmatprep.subr.bf16.mxu0 0
          %1235 = vmatpush1.bf16.xpose.msra.mxu0 0
          %1236 = vmatprep.subr.bf16.mxu0 0
          %1237 = vmatpush1.bf16.xpose.msra.mxu0 0
          %1238 = vmatprep.subr.bf16.mxu0 0
          %1239 = vmatpush1.bf16.xpose.msra.mxu0 0
          %1240 = vmatprep.subr.bf16.mxu0 0
          %1241 = vmatpush1.bf16.xpose.msra.mxu0 0
          %1242 = vmatprep.subr.bf16.mxu0 0
          %1243 = vmatpush1.bf16.xpose.msra.mxu0 0
          %1244 = vmatprep.mubr.bf16.mxu0 0
          %1245 = vmatmul.mubr.bf16.gmra.mrb[0].mxu0 %v1207
          %v1246 = vpop.f32.mrb[0].mxu0
          %v1247 = vadd.f32 0.0, %v1246
          %v1248 = vpop.f32.mrb[0].mxu0
          %v1249 = vpop.f32.mrb[0].mxu0
          %v1250 = vpop.f32.mrb[0].mxu0
          %1251 = vdwg.mxu0
          %v1252 = vmul.f32 %v1247, 0.088388346
          %v1253 = vsel %vm916, -1e+09, %v1252
          %v1254 = vld [vmem:[#allocation3] sm:$0xff]
          %v1255 = vsel %vm970, %v1253, -inf
          %1256 = vmax.xlane.f32.xlu0 %v1255
          %v1257 = vpop.xlane.xlu0 %1256
          %v1258 = vmax.f32 %v1254, %v1257
          %v1259 = vsub.f32 %v1254, %v1258
          %v1260 = vmul.f32 %v1259, 1.442695
          %v1261 = vpow.pop %v1260
          %1263 = vset.pattern.permute.xlu0 2
          %1264 = vperm.xlu0 %1263, %v1258
          %v1265 = vpop.permute.xlu0 %1264
          %v1267 = vsub.f32 %v1253, %v1265
          %v1268 = vmul.f32 %v1267, 1.442695
          %v1269 = vpow.pop %v1268
          %v1270 = vld [vmem:[#allocation4] sm:$0xff]
          %v1271 = vmul.f32 %v1261, %v1270
          %v1272 = vsel %vm970, %v1269, 0.0
          %1273 = vadd.xlane.f32.xlu0 %v1272
          %v1274 = vpop.xlane.xlu0 %1273
          %v1275 = vadd.f32 %v1271, %v1274
          %vm1276 = vcmask 23568
          %1277 = vst.msk [vmem:[#allocation4] sm:$0xff] %vm1276, %v1275
          %v1278 = vld [vmem:[#allocation5] sm:$0xff]
          %1280 = vset.pattern.permute.xlu0 2
          %1281 = vperm.xlu0 %1280, %v1261
          %v1282 = vpop.permute.xlu0 %1281
          %v1284 = vmul.f32 %v1282, %v1278
          %v1285 = vpack.c.bf16 %v1269, %v1269
          %1286 = vrot.lane.b32.xlu0 %v918, 64
          %v1287 = vpop.permute.xlu0 %1286
          %v1289 = vsel %vm970, %v1285, 0
          %v1292 = vsel %vm1005, %v1287, 0
          %1294 = vmatprep.subr.bf16.mxu0 0
          %1295 = vmatpush1.bf16.msra.mxu0 %v1292
          %1296 = vmatprep.subr.bf16.mxu0 0
          %1297 = vmatpush1.bf16.msra.mxu0 0
          %1298 = vmatprep.subr.bf16.mxu0 0
          %1299 = vmatpush1.bf16.msra.mxu0 0
          %1300 = vmatprep.subr.bf16.mxu0 0
          %1301 = vmatpush1.bf16.msra.mxu0 0
          %1302 = vmatprep.subr.bf16.mxu0 0
          %1303 = vmatpush1.bf16.msra.mxu0 0
          %1304 = vmatprep.subr.bf16.mxu0 0
          %1305 = vmatpush1.bf16.msra.mxu0 0
          %1306 = vmatprep.subr.bf16.mxu0 0
          %1307 = vmatpush1.bf16.msra.mxu0 0
          %1308 = vmatprep.subr.bf16.mxu0 0
          %1309 = vmatpush1.bf16.msra.mxu0 0
          %1310 = vmatprep.subr.bf16.mxu0 0
          %1311 = vmatpush1.bf16.msra.mxu0 0
          %1312 = vmatprep.subr.bf16.mxu0 0
          %1313 = vmatpush1.bf16.msra.mxu0 0
          %1314 = vmatprep.subr.bf16.mxu0 0
          %1315 = vmatpush1.bf16.msra.mxu0 0
          %1316 = vmatprep.subr.bf16.mxu0 0
          %1317 = vmatpush1.bf16.msra.mxu0 0
          %1318 = vmatprep.subr.bf16.mxu0 0
          %1319 = vmatpush1.bf16.msra.mxu0 0
          %1320 = vmatprep.subr.bf16.mxu0 0
          %1321 = vmatpush1.bf16.msra.mxu0 0
          %1322 = vmatprep.subr.bf16.mxu0 0
          %1323 = vmatpush1.bf16.msra.mxu0 0
          %1324 = vmatprep.subr.bf16.mxu0 0
          %1325 = vmatpush1.bf16.msra.mxu0 0
          %1326 = vmatprep.mubr.bf16.mxu0 0
          %1327 = vmatmul.mubr.bf16.gmra.mrb[0].mxu0 %v1289
          %v1328 = vpop.f32.mrb[0].mxu0
          %v1329 = vadd.f32 0.0, %v1328
          %v1330 = vpop.f32.mrb[0].mxu0
          %v1331 = vpop.f32.mrb[0].mxu0
          %v1332 = vpop.f32.mrb[0].mxu0
          %1333 = vdwg.mxu0
          %1335 = vrot.lane.b32.xlu0 %v1329, 64
          %v1336 = vpop.permute.xlu0 %1335
          %v1338 = vadd.f32 %v1284, %v1336
          %vm1339 = vcmask 785920
          %1340 = vst.msk [vmem:[#allocation5] sm:$0xff] %vm1339, %v1338
          %1341 = vst.msk [vmem:[#allocation3] sm:$0xff] %vm1276, %v1258
          %v1342 = vld [vmem:[#allocation2] sm:$0xf]
          %v1344 = vunpack.c.l.b16 %v1342
          %v1345 = vpack.c.b16 %v1344, %v1344
          %1346 = vrot.lane.b32.xlu0 %v1345, 32
          %v1347 = vpop.permute.xlu0 %1346
          %1348 = vrot.lane.b32.xlu0 %v917, 32
          %v1349 = vpop.permute.xlu0 %1348
          %v1351 = vsel %vm920, %v1347, 0
          %v1354 = vsel %vm920, %v1349, 0
          %1356 = vmatprep.subr.bf16.mxu0 0
          %1357 = vmatpush1.bf16.xpose.msra.mxu0 %v1354
          %1358 = vmatprep.subr.bf16.mxu0 0
          %1359 = vmatpush1.bf16.xpose.msra.mxu0 0
          %1360 = vmatprep.subr.bf16.mxu0 0
          %1361 = vmatpush1.bf16.xpose.msra.mxu0 0
          %1362 = vmatprep.subr.bf16.mxu0 0
          %1363 = vmatpush1.bf16.xpose.msra.mxu0 0
          %1364 = vmatprep.subr.bf16.mxu0 0
          %1365 = vmatpush1.bf16.xpose.msra.mxu0 0
          %1366 = vmatprep.subr.bf16.mxu0 0
          %1367 = vmatpush1.bf16.xpose.msra.mxu0 0
          %1368 = vmatprep.subr.bf16.mxu0 0
          %1369 = vmatpush1.bf16.xpose.msra.mxu0 0
          %1370 = vmatprep.subr.bf16.mxu0 0
          %1371 = vmatpush1.bf16.xpose.msra.mxu0 0
          %1372 = vmatprep.subr.bf16.mxu0 0
          %1373 = vmatpush1.bf16.xpose.msra.mxu0 0
          %1374 = vmatprep.subr.bf16.mxu0 0
          %1375 = vmatpush1.bf16.xpose.msra.mxu0 0
          %1376 = vmatprep.subr.bf16.mxu0 0
          %1377 = vmatpush1.bf16.xpose.msra.mxu0 0
          %1378 = vmatprep.subr.bf16.mxu0 0
          %1379 = vmatpush1.bf16.xpose.msra.mxu0 0
          %1380 = vmatprep.subr.bf16.mxu0 0
          %1381 = vmatpush1.bf16.xpose.msra.mxu0 0
          %1382 = vmatprep.subr.bf16.mxu0 0
          %1383 = vmatpush1.bf16.xpose.msra.mxu0 0
          %1384 = vmatprep.subr.bf16.mxu0 0
          %1385 = vmatpush1.bf16.xpose.msra.mxu0 0
          %1386 = vmatprep.subr.bf16.mxu0 0
          %1387 = vmatpush1.bf16.xpose.msra.mxu0 0
          %1388 = vmatprep.mubr.bf16.mxu0 0
          %1389 = vmatmul.mubr.bf16.gmra.mrb[0].mxu0 %v1351
          %v1390 = vpop.f32.mrb[0].mxu0
          %v1391 = vadd.f32 0.0, %v1390
          %v1392 = vpop.f32.mrb[0].mxu0
          %v1393 = vpop.f32.mrb[0].mxu0
          %v1394 = vpop.f32.mrb[0].mxu0
          %1395 = vdwg.mxu0
          %v1396 = vmul.f32 %v1391, 0.088388346
          %v1397 = vsel %vm916, -1e+09, %v1396
          %v1398 = vld [vmem:[#allocation3] sm:$0xff]
          %v1399 = vsel %vm970, %v1397, -inf
          %1400 = vmax.xlane.f32.xlu0 %v1399
          %v1401 = vpop.xlane.xlu0 %1400
          %v1402 = vmax.f32 %v1398, %v1401
          %v1403 = vsub.f32 %v1398, %v1402
          %v1404 = vmul.f32 %v1403, 1.442695
          %v1405 = vpow.pop %v1404
          %1407 = vset.pattern.permute.xlu0 3
          %1408 = vperm.xlu0 %1407, %v1402
          %v1409 = vpop.permute.xlu0 %1408
          %v1411 = vsub.f32 %v1397, %v1409
          %v1412 = vmul.f32 %v1411, 1.442695
          %v1413 = vpow.pop %v1412
          %v1414 = vld [vmem:[#allocation4] sm:$0xff]
          %v1415 = vmul.f32 %v1405, %v1414
          %v1416 = vsel %vm970, %v1413, 0.0
          %1417 = vadd.xlane.f32.xlu0 %v1416
          %v1418 = vpop.xlane.xlu0 %1417
          %v1419 = vadd.f32 %v1415, %v1418
          %vm1420 = vcmask 31768
          %1421 = vst.msk [vmem:[#allocation4] sm:$0xff] %vm1420, %v1419
          %v1422 = vld [vmem:[#allocation5] sm:$0xff]
          %1424 = vset.pattern.permute.xlu0 3
          %1425 = vperm.xlu0 %1424, %v1405
          %v1426 = vpop.permute.xlu0 %1425
          %v1428 = vmul.f32 %v1426, %v1422
          %v1429 = vpack.c.bf16 %v1413, %v1413
          %1430 = vrot.lane.b32.xlu0 %v918, 32
          %v1431 = vpop.permute.xlu0 %1430
          %v1433 = vsel %vm970, %v1429, 0
          %v1436 = vsel %vm1005, %v1431, 0
          %1438 = vmatprep.subr.bf16.mxu0 0
          %1439 = vmatpush1.bf16.msra.mxu0 %v1436
          %1440 = vmatprep.subr.bf16.mxu0 0
          %1441 = vmatpush1.bf16.msra.mxu0 0
          %1442 = vmatprep.subr.bf16.mxu0 0
          %1443 = vmatpush1.bf16.msra.mxu0 0
          %1444 = vmatprep.subr.bf16.mxu0 0
          %1445 = vmatpush1.bf16.msra.mxu0 0
          %1446 = vmatprep.subr.bf16.mxu0 0
          %1447 = vmatpush1.bf16.msra.mxu0 0
          %1448 = vmatprep.subr.bf16.mxu0 0
          %1449 = vmatpush1.bf16.msra.mxu0 0
          %1450 = vmatprep.subr.bf16.mxu0 0
          %1451 = vmatpush1.bf16.msra.mxu0 0
          %1452 = vmatprep.subr.bf16.mxu0 0
          %1453 = vmatpush1.bf16.msra.mxu0 0
          %1454 = vmatprep.subr.bf16.mxu0 0
          %1455 = vmatpush1.bf16.msra.mxu0 0
          %1456 = vmatprep.subr.bf16.mxu0 0
          %1457 = vmatpush1.bf16.msra.mxu0 0
          %1458 = vmatprep.subr.bf16.mxu0 0
          %1459 = vmatpush1.bf16.msra.mxu0 0
          %1460 = vmatprep.subr.bf16.mxu0 0
          %1461 = vmatpush1.bf16.msra.mxu0 0
          %1462 = vmatprep.subr.bf16.mxu0 0
          %1463 = vmatpush1.bf16.msra.mxu0 0
          %1464 = vmatprep.subr.bf16.mxu0 0
          %1465 = vmatpush1.bf16.msra.mxu0 0
          %1466 = vmatprep.subr.bf16.mxu0 0
          %1467 = vmatpush1.bf16.msra.mxu0 0
          %1468 = vmatprep.subr.bf16.mxu0 0
          %1469 = vmatpush1.bf16.msra.mxu0 0
          %1470 = vmatprep.mubr.bf16.mxu0 0
          %1471 = vmatmul.mubr.bf16.gmra.mrb[0].mxu0 %v1433
          %v1472 = vpop.f32.mrb[0].mxu0
          %v1473 = vadd.f32 0.0, %v1472
          %v1474 = vpop.f32.mrb[0].mxu0
          %v1475 = vpop.f32.mrb[0].mxu0
          %v1476 = vpop.f32.mrb[0].mxu0
          %1477 = vdwg.mxu0
          %1479 = vrot.lane.b32.xlu0 %v1473, 96
          %v1480 = vpop.permute.xlu0 %1479
          %v1482 = vadd.f32 %v1428, %v1480
          %vm1483 = vcmask 1048320
          %1484 = vst.msk [vmem:[#allocation5] sm:$0xff] %vm1483, %v1482
          %1485 = vst.msk [vmem:[#allocation3] sm:$0xff] %vm1420, %v1402
        $region100: #{tpu_custom_call.1} parent=67 // pred_fallthru
          _
        %p1486 = scmp.eq.s32.totalorder %s41, 1
        // Predicated region
        $region101: #{tpu_custom_call.1} parent=67 // pred_check
          %p1487 = pneg %p1486
        $region102: #{tpu_custom_call.1} parent=67 // pred_check_branch
          %1489 = sbr.rel (%p1487) target = $region104
        $region103: #{tpu_custom_call.1} parent=67 // pred_region
          %v1490 = vld [vmem:[#allocation4] sm:$0xff]
          %v1491 = vrcp.pop %v1490
          %v1492 = vld [vmem:[#allocation5] sm:$0xff]
          %1494 = vset.pattern.permute.xlu0 0
          %1495 = vperm.xlu0 %1494, %v1491
          %v1496 = vpop.permute.xlu0 %1495
          %v1498 = vmul.f32 %v1492, %v1496
          %vm1499 = vcmask 261120
          %1500 = vst.msk [vmem:[#allocation5] sm:$0xff] %vm1499, %v1498
          %v1501 = vld [vmem:[#allocation5] sm:$0xff]
          %1502 = vset.pattern.permute.xlu0 1
          %1503 = vperm.xlu0 %1502, %v1491
          %v1504 = vpop.permute.xlu0 %1503
          %v1506 = vmul.f32 %v1501, %v1504
          %vm1507 = vcmask 523520
          %1508 = vst.msk [vmem:[#allocation5] sm:$0xff] %vm1507, %v1506
          %v1509 = vld [vmem:[#allocation5] sm:$0xff]
          %1510 = vset.pattern.permute.xlu0 2
          %1511 = vperm.xlu0 %1510, %v1491
          %v1512 = vpop.permute.xlu0 %1511
          %v1514 = vmul.f32 %v1509, %v1512
          %vm1515 = vcmask 785920
          %1516 = vst.msk [vmem:[#allocation5] sm:$0xff] %vm1515, %v1514
          %v1517 = vld [vmem:[#allocation5] sm:$0xff]
          %1518 = vset.pattern.permute.xlu0 3
          %1519 = vperm.xlu0 %1518, %v1491
          %v1520 = vpop.permute.xlu0 %1519
          %v1522 = vmul.f32 %v1517, %v1520
          %vm1523 = vcmask 1048320
          %1524 = vst.msk [vmem:[#allocation5] sm:$0xff] %vm1523, %v1522
          %v1525 = vld [vmem:[#allocation5] sm:$0xff]
          %v1526 = vpack.c.bf16 %v1525, %v1525
          %v1527 = vld [vmem:[#allocation15] sm:$0xf]
          %v1528 = vld [vmem:[#allocation15 + $0x4] sm:$0xf]
          %v1529 = vld [vmem:[#allocation15 + $0x8] sm:$0xf]
          %v1530 = vld [vmem:[#allocation15 + $0xc] sm:$0xf]
          %v1531 = vld [vmem:[#allocation15 + $0x10] sm:$0xf]
          %v1532 = vld [vmem:[#allocation15 + $0x14] sm:$0xf]
          %v1533 = vld [vmem:[#allocation15 + $0x18] sm:$0xf]
          %v1534 = vld [vmem:[#allocation15 + $0x1c] sm:$0xf]
          %v1535 = vld [vmem:[#allocation15 + $0x20] sm:$0xf]
          %v1536 = vld [vmem:[#allocation15 + $0x24] sm:$0xf]
          %v1537 = vld [vmem:[#allocation15 + $0x28] sm:$0xf]
          %v1538 = vld [vmem:[#allocation15 + $0x2c] sm:$0xf]
          %v1539 = vld [vmem:[#allocation15 + $0x30] sm:$0xf]
          %v1540 = vld [vmem:[#allocation15 + $0x34] sm:$0xf]
          %v1541 = vld [vmem:[#allocation15 + $0x38] sm:$0xf]
          %v1542 = vld [vmem:[#allocation15 + $0x3c] sm:$0xf]
          %v1543 = vld [vmem:[%s9] sm:$0x1]
          %v1545 = vlaneseq
          %v1546 = vshrl.u32 %v1545, 7
          %v1547 = vsub.s32 0, %v1546
          %v1548 = vrot.slane %v1543, %v1547
          %v1566 = vunpack.c.l.b16 %v1527
          %v1567 = vunpack.c.l.b16 %v1528
          %v1568 = vunpack.c.l.b16 %v1529
          %v1569 = vunpack.c.l.b16 %v1530
          %v1570 = vunpack.c.l.b16 %v1531
          %v1571 = vunpack.c.l.b16 %v1532
          %v1572 = vunpack.c.l.b16 %v1533
          %v1573 = vunpack.c.l.b16 %v1534
          %v1574 = vunpack.c.l.b16 %v1535
          %v1575 = vunpack.c.l.b16 %v1536
          %v1576 = vunpack.c.l.b16 %v1537
          %v1577 = vunpack.c.l.b16 %v1538
          %v1578 = vunpack.c.l.b16 %v1539
          %v1579 = vunpack.c.l.b16 %v1540
          %v1580 = vunpack.c.l.b16 %v1541
          %v1581 = vunpack.c.l.b16 %v1542
          %v1582 = vpack.c.b16 %v1567, %v1566
          %v1583 = vpack.c.b16 %v1569, %v1568
          %v1584 = vpack.c.b16 %v1571, %v1570
          %v1585 = vpack.c.b16 %v1573, %v1572
          %v1586 = vpack.c.b16 %v1575, %v1574
          %v1587 = vpack.c.b16 %v1577, %v1576
          %v1588 = vpack.c.b16 %v1579, %v1578
          %v1589 = vpack.c.b16 %v1581, %v1580
          %1598 = vmatprep.subr.bf16.mxu0 0
          %1599 = vmatpush1.bf16.msra.mxu0 %v1582
          %1600 = vmatprep.subr.bf16.mxu0 0
          %1601 = vmatpush1.bf16.msra.mxu0 %v1583
          %1602 = vmatprep.subr.bf16.mxu0 0
          %1603 = vmatpush1.bf16.msra.mxu0 %v1584
          %1604 = vmatprep.subr.bf16.mxu0 0
          %1605 = vmatpush1.bf16.msra.mxu0 %v1585
          %1606 = vmatprep.subr.bf16.mxu0 0
          %1607 = vmatpush1.bf16.msra.mxu0 %v1586
          %1608 = vmatprep.subr.bf16.mxu0 0
          %1609 = vmatpush1.bf16.msra.mxu0 %v1587
          %1610 = vmatprep.subr.bf16.mxu0 0
          %1611 = vmatpush1.bf16.msra.mxu0 %v1588
          %1612 = vmatprep.subr.bf16.mxu0 0
          %1613 = vmatpush1.bf16.msra.mxu0 %v1589
          %1614 = vmatprep.subr.bf16.mxu0 0
          %1615 = vmatpush1.bf16.msra.mxu0 0
          %1616 = vmatprep.subr.bf16.mxu0 0
          %1617 = vmatpush1.bf16.msra.mxu0 0
          %1618 = vmatprep.subr.bf16.mxu0 0
          %1619 = vmatpush1.bf16.msra.mxu0 0
          %1620 = vmatprep.subr.bf16.mxu0 0
          %1621 = vmatpush1.bf16.msra.mxu0 0
          %1622 = vmatprep.subr.bf16.mxu0 0
          %1623 = vmatpush1.bf16.msra.mxu0 0
          %1624 = vmatprep.subr.bf16.mxu0 0
          %1625 = vmatpush1.bf16.msra.mxu0 0
          %1626 = vmatprep.subr.bf16.mxu0 0
          %1627 = vmatpush1.bf16.msra.mxu0 0
          %1628 = vmatprep.subr.bf16.mxu0 0
          %1629 = vmatpush1.bf16.msra.mxu0 0
          %1630 = vmatprep.mubr.bf16.mxu0 0
          %1631 = vmatmul.mubr.bf16.gmra.mrb[0].mxu0 %v1526
          %v1632 = vpop.f32.mrb[0].mxu0
          %v1633 = vadd.f32 %v1548, %v1632
          %v1634 = vpop.f32.mrb[0].mxu0
          %v1635 = vpop.f32.mrb[0].mxu0
          %v1636 = vpop.f32.mrb[0].mxu0
          %1637 = vdwg.mxu0
          %v1638 = vld [vmem:[%s482] sm:$0xff]
          %v1639 = vadd.f32 %v1638, %v1633
          %1640 = vadd.xlane.f32.xlu0 %v1639
          %v1641 = vpop.xlane.xlu0 %1640
          %v1642 = vrcp.pop 128.0
          %v1643 = vmul.f32 %v1641, %v1642
          %v1644 = vsub.f32 %v1639, %v1643
          %v1645 = vmul.f32 %v1644, %v1644
          %1646 = vadd.xlane.f32.xlu0 %v1645
          %v1647 = vpop.xlane.xlu0 %1646
          %v1648 = vmul.f32 %v1647, 0.007874016
          %v1649 = vrsqrt.pop %v1648
          %v1650 = vmul.f32 %v1648, %v1649
          %vm1651 = vcmp.eq.f32.partialorder %v1648, inf
          %v1652 = vsel %vm1651, %v1648, %v1650
          %vm1653 = vcmp.eq.f32.partialorder %v1648, 0.0
          %v1654 = vand.u32 %v1648, 2147483648
          %v1655 = vsel %vm1653, %v1654, %v1652
          %v1656 = vld [vmem:[%s10] sm:$0x1]
          %v1658 = vlaneseq
          %v1659 = vshrl.u32 %v1658, 7
          %v1660 = vsub.s32 0, %v1659
          %v1661 = vrot.slane %v1656, %v1660
          %v1663 = vmul.f32 %v1661, %v1644
          %v1664 = vadd.f32 %v1655, 1e-06
          %v1665 = vrcp.pop %v1664
          %v1666 = vmul.f32 %v1663, %v1665
          %v1667 = vld [vmem:[%s11] sm:$0x1]
          %v1669 = vlaneseq
          %v1670 = vshrl.u32 %v1669, 7
          %v1671 = vsub.s32 0, %v1670
          %v1672 = vrot.slane %v1667, %v1671
          %v1674 = vadd.f32 %v1666, %v1672
          %1675 = vst [vmem:[%s552] sm:$0xff] %v1674
        $region104: #{tpu_custom_call.1} parent=67 // pred_fallthru
          _
        %s1676 = sand.u32 %s329, 1
        %s1677 = scalar_lea.sflag [#allocation8], %s1676
        %s1678 = sand.u32 %s329, 1
        %s1679 = smul.addr %s1678, 8
        %s1680 = scalar_lea.vmem [#allocation17], %s1679
        // Predicated region
        $region105: #{tpu_custom_call.1} parent=67 // pred_check
          %p1681 = pneg %p339
        $region106: #{tpu_custom_call.1} parent=67 // pred_check_branch
          %1683 = sbr.rel (%p1681) target = $region108
        $region107: #{tpu_custom_call.1} parent=67 // pred_region
          %s1685 = ssub.s32 128, 128
          %1686 = vsyncadd %s1677, %s1685
          %s1687 = smul.addr %s39, 2
          %s1688 = sadd.s32 %s40, %s1687
          %s1689 = smul.addr %s1688, 128
          %s1690 = scalar_lea.hbm %s12, %s1689
          %s1692 = sshll.u32 %s1680, 4
          %s1693 = int_to_ptr.vmem [resolvable:$true] %s1692
          %1695 = dma.vmem_to_hbm [thread:$0]  %s1693, 128, %s1690, %s1677
        $region108: #{tpu_custom_call.1} parent=67 // pred_fallthru
          _
      $region68: #{tpu_custom_call.1} parent=5 // pred_fallthru
        _
      %p1696 = scmp.le.s32.totalorder 2, %s29
      // Predicated region
      $region109: #{tpu_custom_call.1} parent=5 // pred_check
        %p1697 = pneg %p1696
      $region110: #{tpu_custom_call.1} parent=5 // pred_check_branch
        %1699 = sbr.rel (%p1697) target = $region112
      $region111: #{tpu_custom_call.1} parent=5 // pred_region
        %s1700 = ssub.s32 %s29, 2
        // Predicated region
        $region113: #{tpu_custom_call.1} parent=111 // pred_check
          %p1701 = pneg %p345
        $region114: #{tpu_custom_call.1} parent=111 // pred_check_branch
          %1703 = sbr.rel (%p1701) target = $region116
        $region115: #{tpu_custom_call.1} parent=111 // pred_region
          %s1704 = sand.u32 %s330, 1
          %s1705 = scalar_lea.sflag [#allocation8], %s1704
          %s1706 = sand.u32 %s330, 1
          %s1707 = smul.addr %s1706, 8
          %s1708 = scalar_lea.vmem [#allocation17], %s1707
          %1709 = dma.done %s1705, 128
        $region116: #{tpu_custom_call.1} parent=111 // pred_fallthru
          _
      $region112: #{tpu_custom_call.1} parent=5 // pred_fallthru
        _
    $region6: #{tpu_custom_call.1} parent=1 // loop_footer
      %s33 = sadd.s32 1, %s29
    $region7: #{tpu_custom_call.1} parent=1 // loop_footer_branch
      %28 = sbr.rel target = $region3
    $region8: #{tpu_custom_call.1} parent=1 // loop_exit
      _
    %1710 = vsyncpa [#allocation7], 1
    %s1711 = scalar_lea.sflag [#allocation7], 1
    %1712 = vsyncpa %s1711, 1
    %1713 = vsyncpa [#allocation10], 1
    %s1714 = scalar_lea.sflag [#allocation10], 1
    %1715 = vsyncpa %s1714, 1
    %1716 = vsyncpa [#allocation13], 1
    %1717 = vsyncpa [#allocation16], 1
    %1718 = vsyncpa [#allocation8], 1
    %s1719 = scalar_lea.sflag [#allocation8], 1
    %1720 = vsyncpa %s1719, 1

</llo_original>
